<compile_context>
chip_gen: v5e
topology: v5e:2x2
jax: 0.10.0
libtpu: 0.0.40
codegen_flags: <defaults>
</compile_context>

<pallas_src>
import jax
import jax.numpy as jnp
import numpy as np
from jax.experimental import pallas as pl
from jax.experimental.pallas import tpu as pltpu

# ---------------- config ----------------
B, S = 2, 8
ROWS = B * S
DIM_IN, DIM, DIM_OUT = 4, 32, 4
HEADS, DHEAD = 4, 8            # HEADS * DHEAD == DIM
DEPTH = 2
FF_MULT = 4
FF_DIM = DIM * FF_MULT         # 128 (lane-dense)
MAX_SEQ_LEN = 16
LN_EPS = 1e-5

# ---- global-slab row layout (lanes = DIM), sections start on sublane tiles ----
G_WIN = 0                      # rows [0, DIM_IN)                 : w_in
G_BIAS = 8                     # rows [8, 8 + B*S)                : b_in + pos emb (tiled over batch)
G_LNF_G = 24                   # row 24                           : final LayerNorm gamma
G_LNF_B = 25                   # row 25                           : final LayerNorm beta
G_BOUT = 26                    # row 26, lanes [0, DIM_OUT)       : b_out
G_WOUT = 32                    # rows [32, 32 + DIM), lanes [0,4) : w_out
G_ROWS = 64


# ---------------- in-kernel helpers ----------------
def _layernorm(x, g, b):
    mu = jnp.mean(x, axis=-1, keepdims=True)
    var = jnp.mean((x - mu) ** 2, axis=-1, keepdims=True)
    return (x - mu) * jax.lax.rsqrt(var + LN_EPS) * g + b


def _gelu(x):
    # tanh-approximate GELU; PyTorch nn.GELU() defaults to exact erf.
    # TODO(synk): switch to exact erf GELU if bit-exactness vs. PyTorch is required.
    c = 0.7978845608028654  # sqrt(2/pi)
    return 0.5 * x * (1.0 + jnp.tanh(c * (x + 0.044715 * x * x * x)))


# ---------------- the fused kernel (single invocation, no grid) ----------------
def transformer_kernel(x_ref, glob_ref, wa_ref, vec_ref, wf1_ref, wf2_ref, o_ref):
    # project_in + abs-pos-emb (post_emb_norm=Identity, dropout p=0), batch-flat
    x = x_ref[...]                                            # (B*S, DIM_IN)
    w_in = glob_ref[G_WIN:G_WIN + DIM_IN, :]                  # (DIM_IN, DIM)
    bias_pos = glob_ref[G_BIAS:G_BIAS + ROWS, :]              # (B*S, DIM)
    h = jnp.dot(x, w_in, preferred_element_type=jnp.float32) + bias_pos

    # attn_layers: pre-norm [Attention, FeedForward] x DEPTH with residuals
    for l in range(DEPTH):
        # --- attention block ---
        ln1_g = vec_ref[l, 0:1, 0:DIM]
        ln1_b = vec_ref[l, 0:1, DIM:2 * DIM]
        n = _layernorm(h, ln1_g, ln1_b)

        # fused QKV projection: (B*S, DIM) @ (DIM, 3*DIM); 1/sqrt(DHEAD) is
        # already folded into the wq third of the slab.
        qkv = jnp.dot(n, wa_ref[l, :, 0:3 * DIM],
                      preferred_element_type=jnp.float32)     # (B*S, 3*DIM)

        batch_outs = []
        for b in range(B):
            r0 = b * S
            head_outs = []
            for hh in range(HEADS):
                c0 = hh * DHEAD
                q = qkv[r0:r0 + S, c0:c0 + DHEAD]                       # (S, DHEAD)
                k = qkv[r0:r0 + S, DIM + c0:DIM + c0 + DHEAD]           # (S, DHEAD)
                v = qkv[r0:r0 + S, 2 * DIM + c0:2 * DIM + c0 + DHEAD]   # (S, DHEAD)
                s = jax.lax.dot_general(q, k, (((1,), (1,)), ((), ())),
                                        preferred_element_type=jnp.float32)  # (S, S)
                s = s - jnp.max(s, axis=-1, keepdims=True)
                p = jnp.exp(s)
                p = p / jnp.sum(p, axis=-1, keepdims=True)              # exact softmax
                head_outs.append(jnp.dot(p, v, preferred_element_type=jnp.float32))
            batch_outs.append(jnp.concatenate(head_outs, axis=-1))      # (S, DIM)
        pv_all = jnp.concatenate(batch_outs, axis=0)                    # (B*S, DIM)

        # fused output projection (one (DIM, DIM) matmul) + residual
        h = h + jnp.dot(pv_all, wa_ref[l, :, 3 * DIM:4 * DIM],
                        preferred_element_type=jnp.float32)

        # --- feed-forward block ---
        ln2_g = vec_ref[l, 0:1, 2 * DIM:3 * DIM]
        ln2_b = vec_ref[l, 0:1, 3 * DIM:4 * DIM]
        n = _layernorm(h, ln2_g, ln2_b)
        f = jnp.dot(n, wf1_ref[l], preferred_element_type=jnp.float32) \
            + vec_ref[l, 1:2, :]
        f = _gelu(f)
        f = jnp.dot(f, wf2_ref[l], preferred_element_type=jnp.float32) \
            + vec_ref[l, 2:3, 0:DIM]
        h = h + f

    # final norm of AttentionLayers + project_out
    h = _layernorm(h, glob_ref[G_LNF_G:G_LNF_G + 1, :], glob_ref[G_LNF_B:G_LNF_B + 1, :])
    out = jnp.dot(h, glob_ref[G_WOUT:G_WOUT + DIM, 0:DIM_OUT],
                  preferred_element_type=jnp.float32) \
        + glob_ref[G_BOUT:G_BOUT + 1, 0:DIM_OUT]
    o_ref[...] = out                                           # one (B*S, DIM_OUT) store


# ---------------- wrapper ----------------
def _build_slabs(params):
    """Pack the 19 weights/biases into a few lane-aligned slabs."""
    scale = DHEAD ** -0.5
    pos = params["pos_emb"][:S] * (DIM ** -0.5)                # AbsolutePositionalEmbedding
    bias_pos = jnp.tile(params["b_in"] + pos, (B, 1))          # (B*S, DIM), batch-flat

    # Global slab: w_in | bias_pos | lnf | b_out | w_out   -> (64, 32), one DMA.
    glob = jnp.zeros((G_ROWS, DIM), jnp.float32)
    glob = glob.at[G_WIN:G_WIN + DIM_IN].set(params["w_in"])
    glob = glob.at[G_BIAS:G_BIAS + ROWS].set(bias_pos)
    glob = glob.at[G_LNF_G].set(params["lnf_g"][0])
    glob = glob.at[G_LNF_B].set(params["lnf_b"][0])
    glob = glob.at[G_BOUT, :DIM_OUT].set(params["b_out"][0])
    glob = glob.at[G_WOUT:G_WOUT + DIM, :DIM_OUT].set(params["w_out"])

    # Attention weight slab: [wq*scale | wk | wv | wo] -> (DEPTH, DIM, 4*DIM=128).
    wa = jnp.concatenate(
        [params["wq"] * scale, params["wk"], params["wv"], params["wo"]], axis=-1)

    # Per-layer vector slab (DEPTH, 3, 128):
    #   row 0: ln1_g | ln1_b | ln2_g | ln2_b   (4 * 32 = 128)
    #   row 1: b_ff1 (128)
    #   row 2: b_ff2 padded to 128
    vec_row0 = jnp.concatenate(
        [params["ln1_g"], params["ln1_b"], params["ln2_g"], params["ln2_b"]], axis=-1)
    vec_row2 = jnp.pad(params["b_ff2"], ((0, 0), (0, 0), (0, FF_DIM - DIM)))
    vec = jnp.concatenate([vec_row0, params["b_ff1"], vec_row2], axis=1)

    return glob, wa, vec, params["w_ff1"], params["w_ff2"]


@jax.jit
def continuous_transformer_forward(x, params):
    """x: (B, S, DIM_IN) float32 -> (B, S, DIM_OUT) float32."""
    glob, wa, vec, wf1, wf2 = _build_slabs(params)
    x_flat = x.reshape(ROWS, DIM_IN)

    vmem = pl.BlockSpec(memory_space=pltpu.MemorySpace.VMEM)   # full array, resident once
    out = pl.pallas_call(
        transformer_kernel,
        out_shape=jax.ShapeDtypeStruct((ROWS, DIM_OUT), jnp.float32),
        in_specs=[vmem] * 6,
        out_specs=vmem,
    )(x_flat, glob, wa, vec, wf1, wf2)
    return out.reshape(B, S, DIM_OUT)


# ---------------- pure-JAX reference (for sanity check) ----------------
def reference_forward(x, params):
    pos = params["pos_emb"][:S] * (DIM ** -0.5)

    def ln(t, g, b):
        mu = jnp.mean(t, -1, keepdims=True)
        var = jnp.mean((t - mu) ** 2, -1, keepdims=True)
        return (t - mu) / jnp.sqrt(var + LN_EPS) * g + b

    h = x @ params["w_in"] + params["b_in"]
    h = h + pos
    for l in range(DEPTH):
        n = ln(h, params["ln1_g"][l], params["ln1_b"][l])
        q = n @ params["wq"][l]
        k = n @ params["wk"][l]
        v = n @ params["wv"][l]
        q = q.reshape(B, S, HEADS, DHEAD).transpose(0, 2, 1, 3)
        k = k.reshape(B, S, HEADS, DHEAD).transpose(0, 2, 1, 3)
        v = v.reshape(B, S, HEADS, DHEAD).transpose(0, 2, 1, 3)
        s = jnp.einsum("bhqd,bhkd->bhqk", q, k) / jnp.sqrt(DHEAD)
        p = jax.nn.softmax(s, axis=-1)
        a = jnp.einsum("bhqk,bhkd->bhqd", p, v).transpose(0, 2, 1, 3).reshape(B, S, DIM)
        h = h + a @ params["wo"][l]
        n = ln(h, params["ln2_g"][l], params["ln2_b"][l])
        c = 0.7978845608028654
        f = n @ params["w_ff1"][l] + params["b_ff1"][l]
        f = 0.5 * f * (1.0 + jnp.tanh(c * (f + 0.044715 * f ** 3)))
        f = f @ params["w_ff2"][l] + params["b_ff2"][l]
        h = h + f
    h = ln(h, params["lnf_g"], params["lnf_b"])
    return h @ params["w_out"] + params["b_out"]


# ---------------- deterministic parameter init ----------------
def init_params(key):
    keys = jax.random.split(key, 16)
    k = iter(keys)

    def dense(kk, fan_in, shape):
        return (jax.random.normal(kk, shape, jnp.float32) / np.sqrt(fan_in)).astype(jnp.float32)

    params = {
        "pos_emb": jax.random.normal(next(k), (MAX_SEQ_LEN, DIM), jnp.float32),
        "w_in": dense(next(k), DIM_IN, (DIM_IN, DIM)),
        "b_in": jnp.zeros((1, DIM), jnp.float32),
        "ln1_g": jnp.ones((DEPTH, 1, DIM), jnp.float32),
        "ln1_b": jnp.zeros((DEPTH, 1, DIM), jnp.float32),
        "wq": dense(next(k), DIM, (DEPTH, DIM, DIM)),
        "wk": dense(next(k), DIM, (DEPTH, DIM, DIM)),
        "wv": dense(next(k), DIM, (DEPTH, DIM, DIM)),
        "wo": dense(next(k), DIM, (DEPTH, DIM, DIM)),
        "ln2_g": jnp.ones((DEPTH, 1, DIM), jnp.float32),
        "ln2_b": jnp.zeros((DEPTH, 1, DIM), jnp.float32),
        "w_ff1": dense(next(k), DIM, (DEPTH, DIM, FF_DIM)),
        "b_ff1": jnp.zeros((DEPTH, 1, FF_DIM), jnp.float32),
        "w_ff2": dense(next(k), FF_DIM, (DEPTH, FF_DIM, DIM)),
        "b_ff2": jnp.zeros((DEPTH, 1, DIM), jnp.float32),
        "lnf_g": jnp.ones((1, DIM), jnp.float32),
        "lnf_b": jnp.zeros((1, DIM), jnp.float32),
        "w_out": dense(next(k), DIM, (DIM, DIM_OUT)),
        "b_out": jnp.zeros((1, DIM_OUT), jnp.float32),
    }
    return params


if __name__ == "__main__":
    key = jax.random.PRNGKey(0)
    pkey, xkey = jax.random.split(key)
    params = init_params(pkey)
    x = jax.random.normal(xkey, (B, S, DIM_IN), jnp.float32)

    out = continuous_transformer_forward(x, params)
    out = jax.block_until_ready(out)

    ref = jax.block_until_ready(reference_forward(x, params))
    assert out.shape == (B, S, DIM_OUT)
    np.testing.assert_allclose(np.asarray(out), np.asarray(ref), atol=2e-4, rtol=2e-4)

    print("KERNEL_OK")
</pallas_src>

<mosaic_0001>
module attributes {stable_mosaic.version = 11 : i64} {
  func.func @transformer_kernel(%arg0: memref<16x4xf32, #tpu.memory_space<vmem>>, %arg1: memref<64x32xf32, #tpu.memory_space<vmem>>, %arg2: memref<2x32x128xf32, #tpu.memory_space<vmem>>, %arg3: memref<2x3x128xf32, #tpu.memory_space<vmem>>, %arg4: memref<2x32x128xf32, #tpu.memory_space<vmem>>, %arg5: memref<2x128x32xf32, #tpu.memory_space<vmem>>, %arg6: memref<16x4xf32, #tpu.memory_space<vmem>>) attributes {dimension_semantics = [], scalar_prefetch = 0 : i64, scratch_operands = 0 : i64, tpu.core_type = #tpu.core_type<tc>} {
    %c0 = arith.constant 0 : index
    %c0_0 = arith.constant 0 : index
    %0 = vector.load %arg0[%c0, %c0_0] : memref<16x4xf32, #tpu.memory_space<vmem>>, vector<16x4xf32>
    %c0_1 = arith.constant 0 : index
    %c0_2 = arith.constant 0 : index
    %1 = vector.load %arg1[%c0_1, %c0_2] : memref<64x32xf32, #tpu.memory_space<vmem>>, vector<4x32xf32>
    %c8 = arith.constant 8 : index
    %c0_3 = arith.constant 0 : index
    %2 = vector.load %arg1[%c8, %c0_3] : memref<64x32xf32, #tpu.memory_space<vmem>>, vector<16x32xf32>
    %cst = arith.constant dense<0.000000e+00> : vector<16x32xf32>
    %3 = tpu.matmul %0, %1, %cst {dimension_numbers = #tpu.dot_dimension_numbers<[1], [0], [0], [1], [0, 0, 1, 1], [], []>} : vector<16x4xf32>, vector<4x32xf32>, vector<16x32xf32> -> vector<16x32xf32>
    %4 = arith.addf %3, %2 : vector<16x32xf32>
    %c0_4 = arith.constant 0 : index
    %c0_5 = arith.constant 0 : index
    %c0_6 = arith.constant 0 : index
    %5 = vector.load %arg3[%c0_4, %c0_5, %c0_6] : memref<2x3x128xf32, #tpu.memory_space<vmem>>, vector<1x1x32xf32>
    %6 = vector.shape_cast %5 : vector<1x1x32xf32> to vector<1x32xf32>
    %c0_7 = arith.constant 0 : index
    %c0_8 = arith.constant 0 : index
    %c32 = arith.constant 32 : index
    %7 = vector.load %arg3[%c0_7, %c0_8, %c32] : memref<2x3x128xf32, #tpu.memory_space<vmem>>, vector<1x1x32xf32>
    %8 = vector.shape_cast %7 : vector<1x1x32xf32> to vector<1x32xf32>
    %cst_9 = arith.constant dense<0.000000e+00> : vector<16xf32>
    %9 = vector.multi_reduction <add>, %4, %cst_9 [1] : vector<16x32xf32> to vector<16xf32>
    %10 = vector.shape_cast %9 : vector<16xf32> to vector<16x1xf32>
    %cst_10 = arith.constant 3.200000e+01 : f32
    %11 = vector.broadcast %cst_10 : f32 to vector<16x1xf32>
    %12 = arith.divf %10, %11 : vector<16x1xf32>
    %13 = vector.broadcast %12 : vector<16x1xf32> to vector<16x32xf32>
    %14 = arith.subf %4, %13 : vector<16x32xf32>
    %15 = arith.mulf %14, %14 : vector<16x32xf32>
    %cst_11 = arith.constant dense<0.000000e+00> : vector<16xf32>
    %16 = vector.multi_reduction <add>, %15, %cst_11 [1] : vector<16x32xf32> to vector<16xf32>
    %17 = vector.shape_cast %16 : vector<16xf32> to vector<16x1xf32>
    %cst_12 = arith.constant 3.200000e+01 : f32
    %18 = vector.broadcast %cst_12 : f32 to vector<16x1xf32>
    %19 = arith.divf %17, %18 : vector<16x1xf32>
    %20 = vector.broadcast %12 : vector<16x1xf32> to vector<16x32xf32>
    %21 = arith.subf %4, %20 : vector<16x32xf32>
    %cst_13 = arith.constant 9.99999974E-6 : f32
    %22 = vector.broadcast %cst_13 : f32 to vector<16x1xf32>
    %23 = arith.addf %19, %22 : vector<16x1xf32>
    %24 = math.rsqrt %23 : vector<16x1xf32>
    %25 = vector.broadcast %24 : vector<16x1xf32> to vector<16x32xf32>
    %26 = arith.mulf %21, %25 : vector<16x32xf32>
    %27 = vector.broadcast %6 : vector<1x32xf32> to vector<16x32xf32>
    %28 = arith.mulf %26, %27 : vector<16x32xf32>
    %29 = vector.broadcast %8 : vector<1x32xf32> to vector<16x32xf32>
    %30 = arith.addf %28, %29 : vector<16x32xf32>
    %c0_14 = arith.constant 0 : index
    %c0_15 = arith.constant 0 : index
    %c0_16 = arith.constant 0 : index
    %31 = vector.load %arg2[%c0_14, %c0_15, %c0_16] : memref<2x32x128xf32, #tpu.memory_space<vmem>>, vector<1x32x96xf32>
    %32 = vector.shape_cast %31 : vector<1x32x96xf32> to vector<32x96xf32>
    %cst_17 = arith.constant dense<0.000000e+00> : vector<16x96xf32>
    %33 = tpu.matmul %30, %32, %cst_17 {dimension_numbers = #tpu.dot_dimension_numbers<[1], [0], [0], [1], [0, 0, 1, 1], [], []>} : vector<16x32xf32>, vector<32x96xf32>, vector<16x96xf32> -> vector<16x96xf32>
    %34 = vector.extract_strided_slice %33 {offsets = [0, 0], sizes = [8, 8], strides = [1, 1]} : vector<16x96xf32> to vector<8x8xf32>
    %35 = vector.extract_strided_slice %33 {offsets = [0, 32], sizes = [8, 8], strides = [1, 1]} : vector<16x96xf32> to vector<8x8xf32>
    %36 = vector.extract_strided_slice %33 {offsets = [0, 64], sizes = [8, 8], strides = [1, 1]} : vector<16x96xf32> to vector<8x8xf32>
    %cst_18 = arith.constant dense<0.000000e+00> : vector<8x8xf32>
    %37 = tpu.matmul %34, %35, %cst_18 {dimension_numbers = #tpu.dot_dimension_numbers<[1], [1], [0], [0], [0, 0, 1, 0], [], []>} : vector<8x8xf32>, vector<8x8xf32>, vector<8x8xf32> -> vector<8x8xf32>
    %cst_19 = arith.constant dense<0xFF800000> : vector<8xf32>
    %38 = vector.multi_reduction <maximumf>, %37, %cst_19 [1] : vector<8x8xf32> to vector<8xf32>
    %39 = vector.shape_cast %38 : vector<8xf32> to vector<8x1xf32>
    %40 = vector.broadcast %39 : vector<8x1xf32> to vector<8x8xf32>
    %41 = arith.subf %37, %40 : vector<8x8xf32>
    %42 = math.exp %41 : vector<8x8xf32>
    %cst_20 = arith.constant dense<0.000000e+00> : vector<8xf32>
    %43 = vector.multi_reduction <add>, %42, %cst_20 [1] : vector<8x8xf32> to vector<8xf32>
    %44 = vector.shape_cast %43 : vector<8xf32> to vector<8x1xf32>
    %45 = vector.broadcast %44 : vector<8x1xf32> to vector<8x8xf32>
    %46 = arith.divf %42, %45 : vector<8x8xf32>
    %cst_21 = arith.constant dense<0.000000e+00> : vector<8x8xf32>
    %47 = tpu.matmul %46, %36, %cst_21 {dimension_numbers = #tpu.dot_dimension_numbers<[1], [0], [0], [1], [0, 0, 1, 1], [], []>} : vector<8x8xf32>, vector<8x8xf32>, vector<8x8xf32> -> vector<8x8xf32>
    %48 = vector.extract_strided_slice %33 {offsets = [0, 8], sizes = [8, 8], strides = [1, 1]} : vector<16x96xf32> to vector<8x8xf32>
    %49 = vector.extract_strided_slice %33 {offsets = [0, 40], sizes = [8, 8], strides = [1, 1]} : vector<16x96xf32> to vector<8x8xf32>
    %50 = vector.extract_strided_slice %33 {offsets = [0, 72], sizes = [8, 8], strides = [1, 1]} : vector<16x96xf32> to vector<8x8xf32>
    %cst_22 = arith.constant dense<0.000000e+00> : vector<8x8xf32>
    %51 = tpu.matmul %48, %49, %cst_22 {dimension_numbers = #tpu.dot_dimension_numbers<[1], [1], [0], [0], [0, 0, 1, 0], [], []>} : vector<8x8xf32>, vector<8x8xf32>, vector<8x8xf32> -> vector<8x8xf32>
    %cst_23 = arith.constant dense<0xFF800000> : vector<8xf32>
    %52 = vector.multi_reduction <maximumf>, %51, %cst_23 [1] : vector<8x8xf32> to vector<8xf32>
    %53 = vector.shape_cast %52 : vector<8xf32> to vector<8x1xf32>
    %54 = vector.broadcast %53 : vector<8x1xf32> to vector<8x8xf32>
    %55 = arith.subf %51, %54 : vector<8x8xf32>
    %56 = math.exp %55 : vector<8x8xf32>
    %cst_24 = arith.constant dense<0.000000e+00> : vector<8xf32>
    %57 = vector.multi_reduction <add>, %56, %cst_24 [1] : vector<8x8xf32> to vector<8xf32>
    %58 = vector.shape_cast %57 : vector<8xf32> to vector<8x1xf32>
    %59 = vector.broadcast %58 : vector<8x1xf32> to vector<8x8xf32>
    %60 = arith.divf %56, %59 : vector<8x8xf32>
    %cst_25 = arith.constant dense<0.000000e+00> : vector<8x8xf32>
    %61 = tpu.matmul %60, %50, %cst_25 {dimension_numbers = #tpu.dot_dimension_numbers<[1], [0], [0], [1], [0, 0, 1, 1], [], []>} : vector<8x8xf32>, vector<8x8xf32>, vector<8x8xf32> -> vector<8x8xf32>
    %62 = vector.extract_strided_slice %33 {offsets = [0, 16], sizes = [8, 8], strides = [1, 1]} : vector<16x96xf32> to vector<8x8xf32>
    %63 = vector.extract_strided_slice %33 {offsets = [0, 48], sizes = [8, 8], strides = [1, 1]} : vector<16x96xf32> to vector<8x8xf32>
    %64 = vector.extract_strided_slice %33 {offsets = [0, 80], sizes = [8, 8], strides = [1, 1]} : vector<16x96xf32> to vector<8x8xf32>
    %cst_26 = arith.constant dense<0.000000e+00> : vector<8x8xf32>
    %65 = tpu.matmul %62, %63, %cst_26 {dimension_numbers = #tpu.dot_dimension_numbers<[1], [1], [0], [0], [0, 0, 1, 0], [], []>} : vector<8x8xf32>, vector<8x8xf32>, vector<8x8xf32> -> vector<8x8xf32>
    %cst_27 = arith.constant dense<0xFF800000> : vector<8xf32>
    %66 = vector.multi_reduction <maximumf>, %65, %cst_27 [1] : vector<8x8xf32> to vector<8xf32>
    %67 = vector.shape_cast %66 : vector<8xf32> to vector<8x1xf32>
    %68 = vector.broadcast %67 : vector<8x1xf32> to vector<8x8xf32>
    %69 = arith.subf %65, %68 : vector<8x8xf32>
    %70 = math.exp %69 : vector<8x8xf32>
    %cst_28 = arith.constant dense<0.000000e+00> : vector<8xf32>
    %71 = vector.multi_reduction <add>, %70, %cst_28 [1] : vector<8x8xf32> to vector<8xf32>
    %72 = vector.shape_cast %71 : vector<8xf32> to vector<8x1xf32>
    %73 = vector.broadcast %72 : vector<8x1xf32> to vector<8x8xf32>
    %74 = arith.divf %70, %73 : vector<8x8xf32>
    %cst_29 = arith.constant dense<0.000000e+00> : vector<8x8xf32>
    %75 = tpu.matmul %74, %64, %cst_29 {dimension_numbers = #tpu.dot_dimension_numbers<[1], [0], [0], [1], [0, 0, 1, 1], [], []>} : vector<8x8xf32>, vector<8x8xf32>, vector<8x8xf32> -> vector<8x8xf32>
    %76 = vector.extract_strided_slice %33 {offsets = [0, 24], sizes = [8, 8], strides = [1, 1]} : vector<16x96xf32> to vector<8x8xf32>
    %77 = vector.extract_strided_slice %33 {offsets = [0, 56], sizes = [8, 8], strides = [1, 1]} : vector<16x96xf32> to vector<8x8xf32>
    %78 = vector.extract_strided_slice %33 {offsets = [0, 88], sizes = [8, 8], strides = [1, 1]} : vector<16x96xf32> to vector<8x8xf32>
    %cst_30 = arith.constant dense<0.000000e+00> : vector<8x8xf32>
    %79 = tpu.matmul %76, %77, %cst_30 {dimension_numbers = #tpu.dot_dimension_numbers<[1], [1], [0], [0], [0, 0, 1, 0], [], []>} : vector<8x8xf32>, vector<8x8xf32>, vector<8x8xf32> -> vector<8x8xf32>
    %cst_31 = arith.constant dense<0xFF800000> : vector<8xf32>
    %80 = vector.multi_reduction <maximumf>, %79, %cst_31 [1] : vector<8x8xf32> to vector<8xf32>
    %81 = vector.shape_cast %80 : vector<8xf32> to vector<8x1xf32>
    %82 = vector.broadcast %81 : vector<8x1xf32> to vector<8x8xf32>
    %83 = arith.subf %79, %82 : vector<8x8xf32>
    %84 = math.exp %83 : vector<8x8xf32>
    %cst_32 = arith.constant dense<0.000000e+00> : vector<8xf32>
    %85 = vector.multi_reduction <add>, %84, %cst_32 [1] : vector<8x8xf32> to vector<8xf32>
    %86 = vector.shape_cast %85 : vector<8xf32> to vector<8x1xf32>
    %87 = vector.broadcast %86 : vector<8x1xf32> to vector<8x8xf32>
    %88 = arith.divf %84, %87 : vector<8x8xf32>
    %cst_33 = arith.constant dense<0.000000e+00> : vector<8x8xf32>
    %89 = tpu.matmul %88, %78, %cst_33 {dimension_numbers = #tpu.dot_dimension_numbers<[1], [0], [0], [1], [0, 0, 1, 1], [], []>} : vector<8x8xf32>, vector<8x8xf32>, vector<8x8xf32> -> vector<8x8xf32>
    %90 = tpu.concatenate %47, %61, %75, %89 in 1 : vector<8x8xf32>, vector<8x8xf32>, vector<8x8xf32>, vector<8x8xf32> -> vector<8x32xf32>
    %91 = vector.extract_strided_slice %33 {offsets = [8, 0], sizes = [8, 8], strides = [1, 1]} : vector<16x96xf32> to vector<8x8xf32>
    %92 = vector.extract_strided_slice %33 {offsets = [8, 32], sizes = [8, 8], strides = [1, 1]} : vector<16x96xf32> to vector<8x8xf32>
    %93 = vector.extract_strided_slice %33 {offsets = [8, 64], sizes = [8, 8], strides = [1, 1]} : vector<16x96xf32> to vector<8x8xf32>
    %cst_34 = arith.constant dense<0.000000e+00> : vector<8x8xf32>
    %94 = tpu.matmul %91, %92, %cst_34 {dimension_numbers = #tpu.dot_dimension_numbers<[1], [1], [0], [0], [0, 0, 1, 0], [], []>} : vector<8x8xf32>, vector<8x8xf32>, vector<8x8xf32> -> vector<8x8xf32>
    %cst_35 = arith.constant dense<0xFF800000> : vector<8xf32>
    %95 = vector.multi_reduction <maximumf>, %94, %cst_35 [1] : vector<8x8xf32> to vector<8xf32>
    %96 = vector.shape_cast %95 : vector<8xf32> to vector<8x1xf32>
    %97 = vector.broadcast %96 : vector<8x1xf32> to vector<8x8xf32>
    %98 = arith.subf %94, %97 : vector<8x8xf32>
    %99 = math.exp %98 : vector<8x8xf32>
    %cst_36 = arith.constant dense<0.000000e+00> : vector<8xf32>
    %100 = vector.multi_reduction <add>, %99, %cst_36 [1] : vector<8x8xf32> to vector<8xf32>
    %101 = vector.shape_cast %100 : vector<8xf32> to vector<8x1xf32>
    %102 = vector.broadcast %101 : vector<8x1xf32> to vector<8x8xf32>
    %103 = arith.divf %99, %102 : vector<8x8xf32>
    %cst_37 = arith.constant dense<0.000000e+00> : vector<8x8xf32>
    %104 = tpu.matmul %103, %93, %cst_37 {dimension_numbers = #tpu.dot_dimension_numbers<[1], [0], [0], [1], [0, 0, 1, 1], [], []>} : vector<8x8xf32>, vector<8x8xf32>, vector<8x8xf32> -> vector<8x8xf32>
    %105 = vector.extract_strided_slice %33 {offsets = [8, 8], sizes = [8, 8], strides = [1, 1]} : vector<16x96xf32> to vector<8x8xf32>
    %106 = vector.extract_strided_slice %33 {offsets = [8, 40], sizes = [8, 8], strides = [1, 1]} : vector<16x96xf32> to vector<8x8xf32>
    %107 = vector.extract_strided_slice %33 {offsets = [8, 72], sizes = [8, 8], strides = [1, 1]} : vector<16x96xf32> to vector<8x8xf32>
    %cst_38 = arith.constant dense<0.000000e+00> : vector<8x8xf32>
    %108 = tpu.matmul %105, %106, %cst_38 {dimension_numbers = #tpu.dot_dimension_numbers<[1], [1], [0], [0], [0, 0, 1, 0], [], []>} : vector<8x8xf32>, vector<8x8xf32>, vector<8x8xf32> -> vector<8x8xf32>
    %cst_39 = arith.constant dense<0xFF800000> : vector<8xf32>
    %109 = vector.multi_reduction <maximumf>, %108, %cst_39 [1] : vector<8x8xf32> to vector<8xf32>
    %110 = vector.shape_cast %109 : vector<8xf32> to vector<8x1xf32>
    %111 = vector.broadcast %110 : vector<8x1xf32> to vector<8x8xf32>
    %112 = arith.subf %108, %111 : vector<8x8xf32>
    %113 = math.exp %112 : vector<8x8xf32>
    %cst_40 = arith.constant dense<0.000000e+00> : vector<8xf32>
    %114 = vector.multi_reduction <add>, %113, %cst_40 [1] : vector<8x8xf32> to vector<8xf32>
    %115 = vector.shape_cast %114 : vector<8xf32> to vector<8x1xf32>
    %116 = vector.broadcast %115 : vector<8x1xf32> to vector<8x8xf32>
    %117 = arith.divf %113, %116 : vector<8x8xf32>
    %cst_41 = arith.constant dense<0.000000e+00> : vector<8x8xf32>
    %118 = tpu.matmul %117, %107, %cst_41 {dimension_numbers = #tpu.dot_dimension_numbers<[1], [0], [0], [1], [0, 0, 1, 1], [], []>} : vector<8x8xf32>, vector<8x8xf32>, vector<8x8xf32> -> vector<8x8xf32>
    %119 = vector.extract_strided_slice %33 {offsets = [8, 16], sizes = [8, 8], strides = [1, 1]} : vector<16x96xf32> to vector<8x8xf32>
    %120 = vector.extract_strided_slice %33 {offsets = [8, 48], sizes = [8, 8], strides = [1, 1]} : vector<16x96xf32> to vector<8x8xf32>
    %121 = vector.extract_strided_slice %33 {offsets = [8, 80], sizes = [8, 8], strides = [1, 1]} : vector<16x96xf32> to vector<8x8xf32>
    %cst_42 = arith.constant dense<0.000000e+00> : vector<8x8xf32>
    %122 = tpu.matmul %119, %120, %cst_42 {dimension_numbers = #tpu.dot_dimension_numbers<[1], [1], [0], [0], [0, 0, 1, 0], [], []>} : vector<8x8xf32>, vector<8x8xf32>, vector<8x8xf32> -> vector<8x8xf32>
    %cst_43 = arith.constant dense<0xFF800000> : vector<8xf32>
    %123 = vector.multi_reduction <maximumf>, %122, %cst_43 [1] : vector<8x8xf32> to vector<8xf32>
    %124 = vector.shape_cast %123 : vector<8xf32> to vector<8x1xf32>
    %125 = vector.broadcast %124 : vector<8x1xf32> to vector<8x8xf32>
    %126 = arith.subf %122, %125 : vector<8x8xf32>
    %127 = math.exp %126 : vector<8x8xf32>
    %cst_44 = arith.constant dense<0.000000e+00> : vector<8xf32>
    %128 = vector.multi_reduction <add>, %127, %cst_44 [1] : vector<8x8xf32> to vector<8xf32>
    %129 = vector.shape_cast %128 : vector<8xf32> to vector<8x1xf32>
    %130 = vector.broadcast %129 : vector<8x1xf32> to vector<8x8xf32>
    %131 = arith.divf %127, %130 : vector<8x8xf32>
    %cst_45 = arith.constant dense<0.000000e+00> : vector<8x8xf32>
    %132 = tpu.matmul %131, %121, %cst_45 {dimension_numbers = #tpu.dot_dimension_numbers<[1], [0], [0], [1], [0, 0, 1, 1], [], []>} : vector<8x8xf32>, vector<8x8xf32>, vector<8x8xf32> -> vector<8x8xf32>
    %133 = vector.extract_strided_slice %33 {offsets = [8, 24], sizes = [8, 8], strides = [1, 1]} : vector<16x96xf32> to vector<8x8xf32>
    %134 = vector.extract_strided_slice %33 {offsets = [8, 56], sizes = [8, 8], strides = [1, 1]} : vector<16x96xf32> to vector<8x8xf32>
    %135 = vector.extract_strided_slice %33 {offsets = [8, 88], sizes = [8, 8], strides = [1, 1]} : vector<16x96xf32> to vector<8x8xf32>
    %cst_46 = arith.constant dense<0.000000e+00> : vector<8x8xf32>
    %136 = tpu.matmul %133, %134, %cst_46 {dimension_numbers = #tpu.dot_dimension_numbers<[1], [1], [0], [0], [0, 0, 1, 0], [], []>} : vector<8x8xf32>, vector<8x8xf32>, vector<8x8xf32> -> vector<8x8xf32>
    %cst_47 = arith.constant dense<0xFF800000> : vector<8xf32>
    %137 = vector.multi_reduction <maximumf>, %136, %cst_47 [1] : vector<8x8xf32> to vector<8xf32>
    %138 = vector.shape_cast %137 : vector<8xf32> to vector<8x1xf32>
    %139 = vector.broadcast %138 : vector<8x1xf32> to vector<8x8xf32>
    %140 = arith.subf %136, %139 : vector<8x8xf32>
    %141 = math.exp %140 : vector<8x8xf32>
    %cst_48 = arith.constant dense<0.000000e+00> : vector<8xf32>
    %142 = vector.multi_reduction <add>, %141, %cst_48 [1] : vector<8x8xf32> to vector<8xf32>
    %143 = vector.shape_cast %142 : vector<8xf32> to vector<8x1xf32>
    %144 = vector.broadcast %143 : vector<8x1xf32> to vector<8x8xf32>
    %145 = arith.divf %141, %144 : vector<8x8xf32>
    %cst_49 = arith.constant dense<0.000000e+00> : vector<8x8xf32>
    %146 = tpu.matmul %145, %135, %cst_49 {dimension_numbers = #tpu.dot_dimension_numbers<[1], [0], [0], [1], [0, 0, 1, 1], [], []>} : vector<8x8xf32>, vector<8x8xf32>, vector<8x8xf32> -> vector<8x8xf32>
    %147 = tpu.concatenate %104, %118, %132, %146 in 1 : vector<8x8xf32>, vector<8x8xf32>, vector<8x8xf32>, vector<8x8xf32> -> vector<8x32xf32>
    %148 = tpu.concatenate %90, %147 in 0 : vector<8x32xf32>, vector<8x32xf32> -> vector<16x32xf32>
    %c0_50 = arith.constant 0 : index
    %c0_51 = arith.constant 0 : index
    %c96 = arith.constant 96 : index
    %149 = vector.load %arg2[%c0_50, %c0_51, %c96] : memref<2x32x128xf32, #tpu.memory_space<vmem>>, vector<1x32x32xf32>
    %150 = vector.shape_cast %149 : vector<1x32x32xf32> to vector<32x32xf32>
    %cst_52 = arith.constant dense<0.000000e+00> : vector<16x32xf32>
    %151 = tpu.matmul %148, %150, %cst_52 {dimension_numbers = #tpu.dot_dimension_numbers<[1], [0], [0], [1], [0, 0, 1, 1], [], []>} : vector<16x32xf32>, vector<32x32xf32>, vector<16x32xf32> -> vector<16x32xf32>
    %152 = arith.addf %4, %151 : vector<16x32xf32>
    %c0_53 = arith.constant 0 : index
    %c0_54 = arith.constant 0 : index
    %c64 = arith.constant 64 : index
    %153 = vector.load %arg3[%c0_53, %c0_54, %c64] : memref<2x3x128xf32, #tpu.memory_space<vmem>>, vector<1x1x32xf32>
    %154 = vector.shape_cast %153 : vector<1x1x32xf32> to vector<1x32xf32>
    %c0_55 = arith.constant 0 : index
    %c0_56 = arith.constant 0 : index
    %c96_57 = arith.constant 96 : index
    %155 = vector.load %arg3[%c0_55, %c0_56, %c96_57] : memref<2x3x128xf32, #tpu.memory_space<vmem>>, vector<1x1x32xf32>
    %156 = vector.shape_cast %155 : vector<1x1x32xf32> to vector<1x32xf32>
    %cst_58 = arith.constant dense<0.000000e+00> : vector<16xf32>
    %157 = vector.multi_reduction <add>, %152, %cst_58 [1] : vector<16x32xf32> to vector<16xf32>
    %158 = vector.shape_cast %157 : vector<16xf32> to vector<16x1xf32>
    %cst_59 = arith.constant 3.200000e+01 : f32
    %159 = vector.broadcast %cst_59 : f32 to vector<16x1xf32>
    %160 = arith.divf %158, %159 : vector<16x1xf32>
    %161 = vector.broadcast %160 : vector<16x1xf32> to vector<16x32xf32>
    %162 = arith.subf %152, %161 : vector<16x32xf32>
    %163 = arith.mulf %162, %162 : vector<16x32xf32>
    %cst_60 = arith.constant dense<0.000000e+00> : vector<16xf32>
    %164 = vector.multi_reduction <add>, %163, %cst_60 [1] : vector<16x32xf32> to vector<16xf32>
    %165 = vector.shape_cast %164 : vector<16xf32> to vector<16x1xf32>
    %cst_61 = arith.constant 3.200000e+01 : f32
    %166 = vector.broadcast %cst_61 : f32 to vector<16x1xf32>
    %167 = arith.divf %165, %166 : vector<16x1xf32>
    %168 = vector.broadcast %160 : vector<16x1xf32> to vector<16x32xf32>
    %169 = arith.subf %152, %168 : vector<16x32xf32>
    %cst_62 = arith.constant 9.99999974E-6 : f32
    %170 = vector.broadcast %cst_62 : f32 to vector<16x1xf32>
    %171 = arith.addf %167, %170 : vector<16x1xf32>
    %172 = math.rsqrt %171 : vector<16x1xf32>
    %173 = vector.broadcast %172 : vector<16x1xf32> to vector<16x32xf32>
    %174 = arith.mulf %169, %173 : vector<16x32xf32>
    %175 = vector.broadcast %154 : vector<1x32xf32> to vector<16x32xf32>
    %176 = arith.mulf %174, %175 : vector<16x32xf32>
    %177 = vector.broadcast %156 : vector<1x32xf32> to vector<16x32xf32>
    %178 = arith.addf %176, %177 : vector<16x32xf32>
    %c0_63 = arith.constant 0 : index
    %c0_64 = arith.constant 0 : index
    %c0_65 = arith.constant 0 : index
    %179 = vector.load %arg4[%c0_63, %c0_64, %c0_65] : memref<2x32x128xf32, #tpu.memory_space<vmem>>, vector<1x32x128xf32>
    %180 = vector.shape_cast %179 : vector<1x32x128xf32> to vector<32x128xf32>
    %cst_66 = arith.constant dense<0.000000e+00> : vector<16x128xf32>
    %181 = tpu.matmul %178, %180, %cst_66 {dimension_numbers = #tpu.dot_dimension_numbers<[1], [0], [0], [1], [0, 0, 1, 1], [], []>} : vector<16x32xf32>, vector<32x128xf32>, vector<16x128xf32> -> vector<16x128xf32>
    %c0_67 = arith.constant 0 : index
    %c1 = arith.constant 1 : index
    %c0_68 = arith.constant 0 : index
    %182 = vector.load %arg3[%c0_67, %c1, %c0_68] : memref<2x3x128xf32, #tpu.memory_space<vmem>>, vector<1x1x128xf32>
    %183 = vector.shape_cast %182 : vector<1x1x128xf32> to vector<1x128xf32>
    %184 = vector.broadcast %183 : vector<1x128xf32> to vector<16x128xf32>
    %185 = arith.addf %181, %184 : vector<16x128xf32>
    %cst_69 = arith.constant 5.000000e-01 : f32
    %186 = vector.broadcast %cst_69 : f32 to vector<16x128xf32>
    %187 = arith.mulf %186, %185 : vector<16x128xf32>
    %cst_70 = arith.constant 4.471500e-02 : f32
    %188 = vector.broadcast %cst_70 : f32 to vector<16x128xf32>
    %189 = arith.mulf %188, %185 : vector<16x128xf32>
    %190 = arith.mulf %189, %185 : vector<16x128xf32>
    %191 = arith.mulf %190, %185 : vector<16x128xf32>
    %192 = arith.addf %185, %191 : vector<16x128xf32>
    %cst_71 = arith.constant 0.797884583 : f32
    %193 = vector.broadcast %cst_71 : f32 to vector<16x128xf32>
    %194 = arith.mulf %193, %192 : vector<16x128xf32>
    %195 = math.tanh %194 : vector<16x128xf32>
    %cst_72 = arith.constant 1.000000e+00 : f32
    %196 = vector.broadcast %cst_72 : f32 to vector<16x128xf32>
    %197 = arith.addf %196, %195 : vector<16x128xf32>
    %198 = arith.mulf %187, %197 : vector<16x128xf32>
    %c0_73 = arith.constant 0 : index
    %c0_74 = arith.constant 0 : index
    %c0_75 = arith.constant 0 : index
    %199 = vector.load %arg5[%c0_73, %c0_74, %c0_75] : memref<2x128x32xf32, #tpu.memory_space<vmem>>, vector<1x128x32xf32>
    %200 = vector.shape_cast %199 : vector<1x128x32xf32> to vector<128x32xf32>
    %cst_76 = arith.constant dense<0.000000e+00> : vector<16x32xf32>
    %201 = tpu.matmul %198, %200, %cst_76 {dimension_numbers = #tpu.dot_dimension_numbers<[1], [0], [0], [1], [0, 0, 1, 1], [], []>} : vector<16x128xf32>, vector<128x32xf32>, vector<16x32xf32> -> vector<16x32xf32>
    %c0_77 = arith.constant 0 : index
    %c2 = arith.constant 2 : index
    %c0_78 = arith.constant 0 : index
    %202 = vector.load %arg3[%c0_77, %c2, %c0_78] : memref<2x3x128xf32, #tpu.memory_space<vmem>>, vector<1x1x32xf32>
    %203 = vector.shape_cast %202 : vector<1x1x32xf32> to vector<1x32xf32>
    %204 = vector.broadcast %203 : vector<1x32xf32> to vector<16x32xf32>
    %205 = arith.addf %201, %204 : vector<16x32xf32>
    %206 = arith.addf %152, %205 : vector<16x32xf32>
    %c1_79 = arith.constant 1 : index
    %c0_80 = arith.constant 0 : index
    %c0_81 = arith.constant 0 : index
    %207 = vector.load %arg3[%c1_79, %c0_80, %c0_81] : memref<2x3x128xf32, #tpu.memory_space<vmem>>, vector<1x1x32xf32>
    %208 = vector.shape_cast %207 : vector<1x1x32xf32> to vector<1x32xf32>
    %c1_82 = arith.constant 1 : index
    %c0_83 = arith.constant 0 : index
    %c32_84 = arith.constant 32 : index
    %209 = vector.load %arg3[%c1_82, %c0_83, %c32_84] : memref<2x3x128xf32, #tpu.memory_space<vmem>>, vector<1x1x32xf32>
    %210 = vector.shape_cast %209 : vector<1x1x32xf32> to vector<1x32xf32>
    %cst_85 = arith.constant dense<0.000000e+00> : vector<16xf32>
    %211 = vector.multi_reduction <add>, %206, %cst_85 [1] : vector<16x32xf32> to vector<16xf32>
    %212 = vector.shape_cast %211 : vector<16xf32> to vector<16x1xf32>
    %cst_86 = arith.constant 3.200000e+01 : f32
    %213 = vector.broadcast %cst_86 : f32 to vector<16x1xf32>
    %214 = arith.divf %212, %213 : vector<16x1xf32>
    %215 = vector.broadcast %214 : vector<16x1xf32> to vector<16x32xf32>
    %216 = arith.subf %206, %215 : vector<16x32xf32>
    %217 = arith.mulf %216, %216 : vector<16x32xf32>
    %cst_87 = arith.constant dense<0.000000e+00> : vector<16xf32>
    %218 = vector.multi_reduction <add>, %217, %cst_87 [1] : vector<16x32xf32> to vector<16xf32>
    %219 = vector.shape_cast %218 : vector<16xf32> to vector<16x1xf32>
    %cst_88 = arith.constant 3.200000e+01 : f32
    %220 = vector.broadcast %cst_88 : f32 to vector<16x1xf32>
    %221 = arith.divf %219, %220 : vector<16x1xf32>
    %222 = vector.broadcast %214 : vector<16x1xf32> to vector<16x32xf32>
    %223 = arith.subf %206, %222 : vector<16x32xf32>
    %cst_89 = arith.constant 9.99999974E-6 : f32
    %224 = vector.broadcast %cst_89 : f32 to vector<16x1xf32>
    %225 = arith.addf %221, %224 : vector<16x1xf32>
    %226 = math.rsqrt %225 : vector<16x1xf32>
    %227 = vector.broadcast %226 : vector<16x1xf32> to vector<16x32xf32>
    %228 = arith.mulf %223, %227 : vector<16x32xf32>
    %229 = vector.broadcast %208 : vector<1x32xf32> to vector<16x32xf32>
    %230 = arith.mulf %228, %229 : vector<16x32xf32>
    %231 = vector.broadcast %210 : vector<1x32xf32> to vector<16x32xf32>
    %232 = arith.addf %230, %231 : vector<16x32xf32>
    %c1_90 = arith.constant 1 : index
    %c0_91 = arith.constant 0 : index
    %c0_92 = arith.constant 0 : index
    %233 = vector.load %arg2[%c1_90, %c0_91, %c0_92] : memref<2x32x128xf32, #tpu.memory_space<vmem>>, vector<1x32x96xf32>
    %234 = vector.shape_cast %233 : vector<1x32x96xf32> to vector<32x96xf32>
    %cst_93 = arith.constant dense<0.000000e+00> : vector<16x96xf32>
    %235 = tpu.matmul %232, %234, %cst_93 {dimension_numbers = #tpu.dot_dimension_numbers<[1], [0], [0], [1], [0, 0, 1, 1], [], []>} : vector<16x32xf32>, vector<32x96xf32>, vector<16x96xf32> -> vector<16x96xf32>
    %236 = vector.extract_strided_slice %235 {offsets = [0, 0], sizes = [8, 8], strides = [1, 1]} : vector<16x96xf32> to vector<8x8xf32>
    %237 = vector.extract_strided_slice %235 {offsets = [0, 32], sizes = [8, 8], strides = [1, 1]} : vector<16x96xf32> to vector<8x8xf32>
    %238 = vector.extract_strided_slice %235 {offsets = [0, 64], sizes = [8, 8], strides = [1, 1]} : vector<16x96xf32> to vector<8x8xf32>
    %cst_94 = arith.constant dense<0.000000e+00> : vector<8x8xf32>
    %239 = tpu.matmul %236, %237, %cst_94 {dimension_numbers = #tpu.dot_dimension_numbers<[1], [1], [0], [0], [0, 0, 1, 0], [], []>} : vector<8x8xf32>, vector<8x8xf32>, vector<8x8xf32> -> vector<8x8xf32>
    %cst_95 = arith.constant dense<0xFF800000> : vector<8xf32>
    %240 = vector.multi_reduction <maximumf>, %239, %cst_95 [1] : vector<8x8xf32> to vector<8xf32>
    %241 = vector.shape_cast %240 : vector<8xf32> to vector<8x1xf32>
    %242 = vector.broadcast %241 : vector<8x1xf32> to vector<8x8xf32>
    %243 = arith.subf %239, %242 : vector<8x8xf32>
    %244 = math.exp %243 : vector<8x8xf32>
    %cst_96 = arith.constant dense<0.000000e+00> : vector<8xf32>
    %245 = vector.multi_reduction <add>, %244, %cst_96 [1] : vector<8x8xf32> to vector<8xf32>
    %246 = vector.shape_cast %245 : vector<8xf32> to vector<8x1xf32>
    %247 = vector.broadcast %246 : vector<8x1xf32> to vector<8x8xf32>
    %248 = arith.divf %244, %247 : vector<8x8xf32>
    %cst_97 = arith.constant dense<0.000000e+00> : vector<8x8xf32>
    %249 = tpu.matmul %248, %238, %cst_97 {dimension_numbers = #tpu.dot_dimension_numbers<[1], [0], [0], [1], [0, 0, 1, 1], [], []>} : vector<8x8xf32>, vector<8x8xf32>, vector<8x8xf32> -> vector<8x8xf32>
    %250 = vector.extract_strided_slice %235 {offsets = [0, 8], sizes = [8, 8], strides = [1, 1]} : vector<16x96xf32> to vector<8x8xf32>
    %251 = vector.extract_strided_slice %235 {offsets = [0, 40], sizes = [8, 8], strides = [1, 1]} : vector<16x96xf32> to vector<8x8xf32>
    %252 = vector.extract_strided_slice %235 {offsets = [0, 72], sizes = [8, 8], strides = [1, 1]} : vector<16x96xf32> to vector<8x8xf32>
    %cst_98 = arith.constant dense<0.000000e+00> : vector<8x8xf32>
    %253 = tpu.matmul %250, %251, %cst_98 {dimension_numbers = #tpu.dot_dimension_numbers<[1], [1], [0], [0], [0, 0, 1, 0], [], []>} : vector<8x8xf32>, vector<8x8xf32>, vector<8x8xf32> -> vector<8x8xf32>
    %cst_99 = arith.constant dense<0xFF800000> : vector<8xf32>
    %254 = vector.multi_reduction <maximumf>, %253, %cst_99 [1] : vector<8x8xf32> to vector<8xf32>
    %255 = vector.shape_cast %254 : vector<8xf32> to vector<8x1xf32>
    %256 = vector.broadcast %255 : vector<8x1xf32> to vector<8x8xf32>
    %257 = arith.subf %253, %256 : vector<8x8xf32>
    %258 = math.exp %257 : vector<8x8xf32>
    %cst_100 = arith.constant dense<0.000000e+00> : vector<8xf32>
    %259 = vector.multi_reduction <add>, %258, %cst_100 [1] : vector<8x8xf32> to vector<8xf32>
    %260 = vector.shape_cast %259 : vector<8xf32> to vector<8x1xf32>
    %261 = vector.broadcast %260 : vector<8x1xf32> to vector<8x8xf32>
    %262 = arith.divf %258, %261 : vector<8x8xf32>
    %cst_101 = arith.constant dense<0.000000e+00> : vector<8x8xf32>
    %263 = tpu.matmul %262, %252, %cst_101 {dimension_numbers = #tpu.dot_dimension_numbers<[1], [0], [0], [1], [0, 0, 1, 1], [], []>} : vector<8x8xf32>, vector<8x8xf32>, vector<8x8xf32> -> vector<8x8xf32>
    %264 = vector.extract_strided_slice %235 {offsets = [0, 16], sizes = [8, 8], strides = [1, 1]} : vector<16x96xf32> to vector<8x8xf32>
    %265 = vector.extract_strided_slice %235 {offsets = [0, 48], sizes = [8, 8], strides = [1, 1]} : vector<16x96xf32> to vector<8x8xf32>
    %266 = vector.extract_strided_slice %235 {offsets = [0, 80], sizes = [8, 8], strides = [1, 1]} : vector<16x96xf32> to vector<8x8xf32>
    %cst_102 = arith.constant dense<0.000000e+00> : vector<8x8xf32>
    %267 = tpu.matmul %264, %265, %cst_102 {dimension_numbers = #tpu.dot_dimension_numbers<[1], [1], [0], [0], [0, 0, 1, 0], [], []>} : vector<8x8xf32>, vector<8x8xf32>, vector<8x8xf32> -> vector<8x8xf32>
    %cst_103 = arith.constant dense<0xFF800000> : vector<8xf32>
    %268 = vector.multi_reduction <maximumf>, %267, %cst_103 [1] : vector<8x8xf32> to vector<8xf32>
    %269 = vector.shape_cast %268 : vector<8xf32> to vector<8x1xf32>
    %270 = vector.broadcast %269 : vector<8x1xf32> to vector<8x8xf32>
    %271 = arith.subf %267, %270 : vector<8x8xf32>
    %272 = math.exp %271 : vector<8x8xf32>
    %cst_104 = arith.constant dense<0.000000e+00> : vector<8xf32>
    %273 = vector.multi_reduction <add>, %272, %cst_104 [1] : vector<8x8xf32> to vector<8xf32>
    %274 = vector.shape_cast %273 : vector<8xf32> to vector<8x1xf32>
    %275 = vector.broadcast %274 : vector<8x1xf32> to vector<8x8xf32>
    %276 = arith.divf %272, %275 : vector<8x8xf32>
    %cst_105 = arith.constant dense<0.000000e+00> : vector<8x8xf32>
    %277 = tpu.matmul %276, %266, %cst_105 {dimension_numbers = #tpu.dot_dimension_numbers<[1], [0], [0], [1], [0, 0, 1, 1], [], []>} : vector<8x8xf32>, vector<8x8xf32>, vector<8x8xf32> -> vector<8x8xf32>
    %278 = vector.extract_strided_slice %235 {offsets = [0, 24], sizes = [8, 8], strides = [1, 1]} : vector<16x96xf32> to vector<8x8xf32>
    %279 = vector.extract_strided_slice %235 {offsets = [0, 56], sizes = [8, 8], strides = [1, 1]} : vector<16x96xf32> to vector<8x8xf32>
    %280 = vector.extract_strided_slice %235 {offsets = [0, 88], sizes = [8, 8], strides = [1, 1]} : vector<16x96xf32> to vector<8x8xf32>
    %cst_106 = arith.constant dense<0.000000e+00> : vector<8x8xf32>
    %281 = tpu.matmul %278, %279, %cst_106 {dimension_numbers = #tpu.dot_dimension_numbers<[1], [1], [0], [0], [0, 0, 1, 0], [], []>} : vector<8x8xf32>, vector<8x8xf32>, vector<8x8xf32> -> vector<8x8xf32>
    %cst_107 = arith.constant dense<0xFF800000> : vector<8xf32>
    %282 = vector.multi_reduction <maximumf>, %281, %cst_107 [1] : vector<8x8xf32> to vector<8xf32>
    %283 = vector.shape_cast %282 : vector<8xf32> to vector<8x1xf32>
    %284 = vector.broadcast %283 : vector<8x1xf32> to vector<8x8xf32>
    %285 = arith.subf %281, %284 : vector<8x8xf32>
    %286 = math.exp %285 : vector<8x8xf32>
    %cst_108 = arith.constant dense<0.000000e+00> : vector<8xf32>
    %287 = vector.multi_reduction <add>, %286, %cst_108 [1] : vector<8x8xf32> to vector<8xf32>
    %288 = vector.shape_cast %287 : vector<8xf32> to vector<8x1xf32>
    %289 = vector.broadcast %288 : vector<8x1xf32> to vector<8x8xf32>
    %290 = arith.divf %286, %289 : vector<8x8xf32>
    %cst_109 = arith.constant dense<0.000000e+00> : vector<8x8xf32>
    %291 = tpu.matmul %290, %280, %cst_109 {dimension_numbers = #tpu.dot_dimension_numbers<[1], [0], [0], [1], [0, 0, 1, 1], [], []>} : vector<8x8xf32>, vector<8x8xf32>, vector<8x8xf32> -> vector<8x8xf32>
    %292 = tpu.concatenate %249, %263, %277, %291 in 1 : vector<8x8xf32>, vector<8x8xf32>, vector<8x8xf32>, vector<8x8xf32> -> vector<8x32xf32>
    %293 = vector.extract_strided_slice %235 {offsets = [8, 0], sizes = [8, 8], strides = [1, 1]} : vector<16x96xf32> to vector<8x8xf32>
    %294 = vector.extract_strided_slice %235 {offsets = [8, 32], sizes = [8, 8], strides = [1, 1]} : vector<16x96xf32> to vector<8x8xf32>
    %295 = vector.extract_strided_slice %235 {offsets = [8, 64], sizes = [8, 8], strides = [1, 1]} : vector<16x96xf32> to vector<8x8xf32>
    %cst_110 = arith.constant dense<0.000000e+00> : vector<8x8xf32>
    %296 = tpu.matmul %293, %294, %cst_110 {dimension_numbers = #tpu.dot_dimension_numbers<[1], [1], [0], [0], [0, 0, 1, 0], [], []>} : vector<8x8xf32>, vector<8x8xf32>, vector<8x8xf32> -> vector<8x8xf32>
    %cst_111 = arith.constant dense<0xFF800000> : vector<8xf32>
    %297 = vector.multi_reduction <maximumf>, %296, %cst_111 [1] : vector<8x8xf32> to vector<8xf32>
    %298 = vector.shape_cast %297 : vector<8xf32> to vector<8x1xf32>
    %299 = vector.broadcast %298 : vector<8x1xf32> to vector<8x8xf32>
    %300 = arith.subf %296, %299 : vector<8x8xf32>
    %301 = math.exp %300 : vector<8x8xf32>
    %cst_112 = arith.constant dense<0.000000e+00> : vector<8xf32>
    %302 = vector.multi_reduction <add>, %301, %cst_112 [1] : vector<8x8xf32> to vector<8xf32>
    %303 = vector.shape_cast %302 : vector<8xf32> to vector<8x1xf32>
    %304 = vector.broadcast %303 : vector<8x1xf32> to vector<8x8xf32>
    %305 = arith.divf %301, %304 : vector<8x8xf32>
    %cst_113 = arith.constant dense<0.000000e+00> : vector<8x8xf32>
    %306 = tpu.matmul %305, %295, %cst_113 {dimension_numbers = #tpu.dot_dimension_numbers<[1], [0], [0], [1], [0, 0, 1, 1], [], []>} : vector<8x8xf32>, vector<8x8xf32>, vector<8x8xf32> -> vector<8x8xf32>
    %307 = vector.extract_strided_slice %235 {offsets = [8, 8], sizes = [8, 8], strides = [1, 1]} : vector<16x96xf32> to vector<8x8xf32>
    %308 = vector.extract_strided_slice %235 {offsets = [8, 40], sizes = [8, 8], strides = [1, 1]} : vector<16x96xf32> to vector<8x8xf32>
    %309 = vector.extract_strided_slice %235 {offsets = [8, 72], sizes = [8, 8], strides = [1, 1]} : vector<16x96xf32> to vector<8x8xf32>
    %cst_114 = arith.constant dense<0.000000e+00> : vector<8x8xf32>
    %310 = tpu.matmul %307, %308, %cst_114 {dimension_numbers = #tpu.dot_dimension_numbers<[1], [1], [0], [0], [0, 0, 1, 0], [], []>} : vector<8x8xf32>, vector<8x8xf32>, vector<8x8xf32> -> vector<8x8xf32>
    %cst_115 = arith.constant dense<0xFF800000> : vector<8xf32>
    %311 = vector.multi_reduction <maximumf>, %310, %cst_115 [1] : vector<8x8xf32> to vector<8xf32>
    %312 = vector.shape_cast %311 : vector<8xf32> to vector<8x1xf32>
    %313 = vector.broadcast %312 : vector<8x1xf32> to vector<8x8xf32>
    %314 = arith.subf %310, %313 : vector<8x8xf32>
    %315 = math.exp %314 : vector<8x8xf32>
    %cst_116 = arith.constant dense<0.000000e+00> : vector<8xf32>
    %316 = vector.multi_reduction <add>, %315, %cst_116 [1] : vector<8x8xf32> to vector<8xf32>
    %317 = vector.shape_cast %316 : vector<8xf32> to vector<8x1xf32>
    %318 = vector.broadcast %317 : vector<8x1xf32> to vector<8x8xf32>
    %319 = arith.divf %315, %318 : vector<8x8xf32>
    %cst_117 = arith.constant dense<0.000000e+00> : vector<8x8xf32>
    %320 = tpu.matmul %319, %309, %cst_117 {dimension_numbers = #tpu.dot_dimension_numbers<[1], [0], [0], [1], [0, 0, 1, 1], [], []>} : vector<8x8xf32>, vector<8x8xf32>, vector<8x8xf32> -> vector<8x8xf32>
    %321 = vector.extract_strided_slice %235 {offsets = [8, 16], sizes = [8, 8], strides = [1, 1]} : vector<16x96xf32> to vector<8x8xf32>
    %322 = vector.extract_strided_slice %235 {offsets = [8, 48], sizes = [8, 8], strides = [1, 1]} : vector<16x96xf32> to vector<8x8xf32>
    %323 = vector.extract_strided_slice %235 {offsets = [8, 80], sizes = [8, 8], strides = [1, 1]} : vector<16x96xf32> to vector<8x8xf32>
    %cst_118 = arith.constant dense<0.000000e+00> : vector<8x8xf32>
    %324 = tpu.matmul %321, %322, %cst_118 {dimension_numbers = #tpu.dot_dimension_numbers<[1], [1], [0], [0], [0, 0, 1, 0], [], []>} : vector<8x8xf32>, vector<8x8xf32>, vector<8x8xf32> -> vector<8x8xf32>
    %cst_119 = arith.constant dense<0xFF800000> : vector<8xf32>
    %325 = vector.multi_reduction <maximumf>, %324, %cst_119 [1] : vector<8x8xf32> to vector<8xf32>
    %326 = vector.shape_cast %325 : vector<8xf32> to vector<8x1xf32>
    %327 = vector.broadcast %326 : vector<8x1xf32> to vector<8x8xf32>
    %328 = arith.subf %324, %327 : vector<8x8xf32>
    %329 = math.exp %328 : vector<8x8xf32>
    %cst_120 = arith.constant dense<0.000000e+00> : vector<8xf32>
    %330 = vector.multi_reduction <add>, %329, %cst_120 [1] : vector<8x8xf32> to vector<8xf32>
    %331 = vector.shape_cast %330 : vector<8xf32> to vector<8x1xf32>
    %332 = vector.broadcast %331 : vector<8x1xf32> to vector<8x8xf32>
    %333 = arith.divf %329, %332 : vector<8x8xf32>
    %cst_121 = arith.constant dense<0.000000e+00> : vector<8x8xf32>
    %334 = tpu.matmul %333, %323, %cst_121 {dimension_numbers = #tpu.dot_dimension_numbers<[1], [0], [0], [1], [0, 0, 1, 1], [], []>} : vector<8x8xf32>, vector<8x8xf32>, vector<8x8xf32> -> vector<8x8xf32>
    %335 = vector.extract_strided_slice %235 {offsets = [8, 24], sizes = [8, 8], strides = [1, 1]} : vector<16x96xf32> to vector<8x8xf32>
    %336 = vector.extract_strided_slice %235 {offsets = [8, 56], sizes = [8, 8], strides = [1, 1]} : vector<16x96xf32> to vector<8x8xf32>
    %337 = vector.extract_strided_slice %235 {offsets = [8, 88], sizes = [8, 8], strides = [1, 1]} : vector<16x96xf32> to vector<8x8xf32>
    %cst_122 = arith.constant dense<0.000000e+00> : vector<8x8xf32>
    %338 = tpu.matmul %335, %336, %cst_122 {dimension_numbers = #tpu.dot_dimension_numbers<[1], [1], [0], [0], [0, 0, 1, 0], [], []>} : vector<8x8xf32>, vector<8x8xf32>, vector<8x8xf32> -> vector<8x8xf32>
    %cst_123 = arith.constant dense<0xFF800000> : vector<8xf32>
    %339 = vector.multi_reduction <maximumf>, %338, %cst_123 [1] : vector<8x8xf32> to vector<8xf32>
    %340 = vector.shape_cast %339 : vector<8xf32> to vector<8x1xf32>
    %341 = vector.broadcast %340 : vector<8x1xf32> to vector<8x8xf32>
    %342 = arith.subf %338, %341 : vector<8x8xf32>
    %343 = math.exp %342 : vector<8x8xf32>
    %cst_124 = arith.constant dense<0.000000e+00> : vector<8xf32>
    %344 = vector.multi_reduction <add>, %343, %cst_124 [1] : vector<8x8xf32> to vector<8xf32>
    %345 = vector.shape_cast %344 : vector<8xf32> to vector<8x1xf32>
    %346 = vector.broadcast %345 : vector<8x1xf32> to vector<8x8xf32>
    %347 = arith.divf %343, %346 : vector<8x8xf32>
    %cst_125 = arith.constant dense<0.000000e+00> : vector<8x8xf32>
    %348 = tpu.matmul %347, %337, %cst_125 {dimension_numbers = #tpu.dot_dimension_numbers<[1], [0], [0], [1], [0, 0, 1, 1], [], []>} : vector<8x8xf32>, vector<8x8xf32>, vector<8x8xf32> -> vector<8x8xf32>
    %349 = tpu.concatenate %306, %320, %334, %348 in 1 : vector<8x8xf32>, vector<8x8xf32>, vector<8x8xf32>, vector<8x8xf32> -> vector<8x32xf32>
    %350 = tpu.concatenate %292, %349 in 0 : vector<8x32xf32>, vector<8x32xf32> -> vector<16x32xf32>
    %c1_126 = arith.constant 1 : index
    %c0_127 = arith.constant 0 : index
    %c96_128 = arith.constant 96 : index
    %351 = vector.load %arg2[%c1_126, %c0_127, %c96_128] : memref<2x32x128xf32, #tpu.memory_space<vmem>>, vector<1x32x32xf32>
    %352 = vector.shape_cast %351 : vector<1x32x32xf32> to vector<32x32xf32>
    %cst_129 = arith.constant dense<0.000000e+00> : vector<16x32xf32>
    %353 = tpu.matmul %350, %352, %cst_129 {dimension_numbers = #tpu.dot_dimension_numbers<[1], [0], [0], [1], [0, 0, 1, 1], [], []>} : vector<16x32xf32>, vector<32x32xf32>, vector<16x32xf32> -> vector<16x32xf32>
    %354 = arith.addf %206, %353 : vector<16x32xf32>
    %c1_130 = arith.constant 1 : index
    %c0_131 = arith.constant 0 : index
    %c64_132 = arith.constant 64 : index
    %355 = vector.load %arg3[%c1_130, %c0_131, %c64_132] : memref<2x3x128xf32, #tpu.memory_space<vmem>>, vector<1x1x32xf32>
    %356 = vector.shape_cast %355 : vector<1x1x32xf32> to vector<1x32xf32>
    %c1_133 = arith.constant 1 : index
    %c0_134 = arith.constant 0 : index
    %c96_135 = arith.constant 96 : index
    %357 = vector.load %arg3[%c1_133, %c0_134, %c96_135] : memref<2x3x128xf32, #tpu.memory_space<vmem>>, vector<1x1x32xf32>
    %358 = vector.shape_cast %357 : vector<1x1x32xf32> to vector<1x32xf32>
    %cst_136 = arith.constant dense<0.000000e+00> : vector<16xf32>
    %359 = vector.multi_reduction <add>, %354, %cst_136 [1] : vector<16x32xf32> to vector<16xf32>
    %360 = vector.shape_cast %359 : vector<16xf32> to vector<16x1xf32>
    %cst_137 = arith.constant 3.200000e+01 : f32
    %361 = vector.broadcast %cst_137 : f32 to vector<16x1xf32>
    %362 = arith.divf %360, %361 : vector<16x1xf32>
    %363 = vector.broadcast %362 : vector<16x1xf32> to vector<16x32xf32>
    %364 = arith.subf %354, %363 : vector<16x32xf32>
    %365 = arith.mulf %364, %364 : vector<16x32xf32>
    %cst_138 = arith.constant dense<0.000000e+00> : vector<16xf32>
    %366 = vector.multi_reduction <add>, %365, %cst_138 [1] : vector<16x32xf32> to vector<16xf32>
    %367 = vector.shape_cast %366 : vector<16xf32> to vector<16x1xf32>
    %cst_139 = arith.constant 3.200000e+01 : f32
    %368 = vector.broadcast %cst_139 : f32 to vector<16x1xf32>
    %369 = arith.divf %367, %368 : vector<16x1xf32>
    %370 = vector.broadcast %362 : vector<16x1xf32> to vector<16x32xf32>
    %371 = arith.subf %354, %370 : vector<16x32xf32>
    %cst_140 = arith.constant 9.99999974E-6 : f32
    %372 = vector.broadcast %cst_140 : f32 to vector<16x1xf32>
    %373 = arith.addf %369, %372 : vector<16x1xf32>
    %374 = math.rsqrt %373 : vector<16x1xf32>
    %375 = vector.broadcast %374 : vector<16x1xf32> to vector<16x32xf32>
    %376 = arith.mulf %371, %375 : vector<16x32xf32>
    %377 = vector.broadcast %356 : vector<1x32xf32> to vector<16x32xf32>
    %378 = arith.mulf %376, %377 : vector<16x32xf32>
    %379 = vector.broadcast %358 : vector<1x32xf32> to vector<16x32xf32>
    %380 = arith.addf %378, %379 : vector<16x32xf32>
    %c1_141 = arith.constant 1 : index
    %c0_142 = arith.constant 0 : index
    %c0_143 = arith.constant 0 : index
    %381 = vector.load %arg4[%c1_141, %c0_142, %c0_143] : memref<2x32x128xf32, #tpu.memory_space<vmem>>, vector<1x32x128xf32>
    %382 = vector.shape_cast %381 : vector<1x32x128xf32> to vector<32x128xf32>
    %cst_144 = arith.constant dense<0.000000e+00> : vector<16x128xf32>
    %383 = tpu.matmul %380, %382, %cst_144 {dimension_numbers = #tpu.dot_dimension_numbers<[1], [0], [0], [1], [0, 0, 1, 1], [], []>} : vector<16x32xf32>, vector<32x128xf32>, vector<16x128xf32> -> vector<16x128xf32>
    %c1_145 = arith.constant 1 : index
    %c1_146 = arith.constant 1 : index
    %c0_147 = arith.constant 0 : index
    %384 = vector.load %arg3[%c1_145, %c1_146, %c0_147] : memref<2x3x128xf32, #tpu.memory_space<vmem>>, vector<1x1x128xf32>
    %385 = vector.shape_cast %384 : vector<1x1x128xf32> to vector<1x128xf32>
    %386 = vector.broadcast %385 : vector<1x128xf32> to vector<16x128xf32>
    %387 = arith.addf %383, %386 : vector<16x128xf32>
    %cst_148 = arith.constant 5.000000e-01 : f32
    %388 = vector.broadcast %cst_148 : f32 to vector<16x128xf32>
    %389 = arith.mulf %388, %387 : vector<16x128xf32>
    %cst_149 = arith.constant 4.471500e-02 : f32
    %390 = vector.broadcast %cst_149 : f32 to vector<16x128xf32>
    %391 = arith.mulf %390, %387 : vector<16x128xf32>
    %392 = arith.mulf %391, %387 : vector<16x128xf32>
    %393 = arith.mulf %392, %387 : vector<16x128xf32>
    %394 = arith.addf %387, %393 : vector<16x128xf32>
    %cst_150 = arith.constant 0.797884583 : f32
    %395 = vector.broadcast %cst_150 : f32 to vector<16x128xf32>
    %396 = arith.mulf %395, %394 : vector<16x128xf32>
    %397 = math.tanh %396 : vector<16x128xf32>
    %cst_151 = arith.constant 1.000000e+00 : f32
    %398 = vector.broadcast %cst_151 : f32 to vector<16x128xf32>
    %399 = arith.addf %398, %397 : vector<16x128xf32>
    %400 = arith.mulf %389, %399 : vector<16x128xf32>
    %c1_152 = arith.constant 1 : index
    %c0_153 = arith.constant 0 : index
    %c0_154 = arith.constant 0 : index
    %401 = vector.load %arg5[%c1_152, %c0_153, %c0_154] : memref<2x128x32xf32, #tpu.memory_space<vmem>>, vector<1x128x32xf32>
    %402 = vector.shape_cast %401 : vector<1x128x32xf32> to vector<128x32xf32>
    %cst_155 = arith.constant dense<0.000000e+00> : vector<16x32xf32>
    %403 = tpu.matmul %400, %402, %cst_155 {dimension_numbers = #tpu.dot_dimension_numbers<[1], [0], [0], [1], [0, 0, 1, 1], [], []>} : vector<16x128xf32>, vector<128x32xf32>, vector<16x32xf32> -> vector<16x32xf32>
    %c1_156 = arith.constant 1 : index
    %c2_157 = arith.constant 2 : index
    %c0_158 = arith.constant 0 : index
    %404 = vector.load %arg3[%c1_156, %c2_157, %c0_158] : memref<2x3x128xf32, #tpu.memory_space<vmem>>, vector<1x1x32xf32>
    %405 = vector.shape_cast %404 : vector<1x1x32xf32> to vector<1x32xf32>
    %406 = vector.broadcast %405 : vector<1x32xf32> to vector<16x32xf32>
    %407 = arith.addf %403, %406 : vector<16x32xf32>
    %408 = arith.addf %354, %407 : vector<16x32xf32>
    %c24 = arith.constant 24 : index
    %c0_159 = arith.constant 0 : index
    %409 = vector.load %arg1[%c24, %c0_159] : memref<64x32xf32, #tpu.memory_space<vmem>>, vector<1x32xf32>
    %c25 = arith.constant 25 : index
    %c0_160 = arith.constant 0 : index
    %410 = vector.load %arg1[%c25, %c0_160] : memref<64x32xf32, #tpu.memory_space<vmem>>, vector<1x32xf32>
    %cst_161 = arith.constant dense<0.000000e+00> : vector<16xf32>
    %411 = vector.multi_reduction <add>, %408, %cst_161 [1] : vector<16x32xf32> to vector<16xf32>
    %412 = vector.shape_cast %411 : vector<16xf32> to vector<16x1xf32>
    %cst_162 = arith.constant 3.200000e+01 : f32
    %413 = vector.broadcast %cst_162 : f32 to vector<16x1xf32>
    %414 = arith.divf %412, %413 : vector<16x1xf32>
    %415 = vector.broadcast %414 : vector<16x1xf32> to vector<16x32xf32>
    %416 = arith.subf %408, %415 : vector<16x32xf32>
    %417 = arith.mulf %416, %416 : vector<16x32xf32>
    %cst_163 = arith.constant dense<0.000000e+00> : vector<16xf32>
    %418 = vector.multi_reduction <add>, %417, %cst_163 [1] : vector<16x32xf32> to vector<16xf32>
    %419 = vector.shape_cast %418 : vector<16xf32> to vector<16x1xf32>
    %cst_164 = arith.constant 3.200000e+01 : f32
    %420 = vector.broadcast %cst_164 : f32 to vector<16x1xf32>
    %421 = arith.divf %419, %420 : vector<16x1xf32>
    %422 = vector.broadcast %414 : vector<16x1xf32> to vector<16x32xf32>
    %423 = arith.subf %408, %422 : vector<16x32xf32>
    %cst_165 = arith.constant 9.99999974E-6 : f32
    %424 = vector.broadcast %cst_165 : f32 to vector<16x1xf32>
    %425 = arith.addf %421, %424 : vector<16x1xf32>
    %426 = math.rsqrt %425 : vector<16x1xf32>
    %427 = vector.broadcast %426 : vector<16x1xf32> to vector<16x32xf32>
    %428 = arith.mulf %423, %427 : vector<16x32xf32>
    %429 = vector.broadcast %409 : vector<1x32xf32> to vector<16x32xf32>
    %430 = arith.mulf %428, %429 : vector<16x32xf32>
    %431 = vector.broadcast %410 : vector<1x32xf32> to vector<16x32xf32>
    %432 = arith.addf %430, %431 : vector<16x32xf32>
    %c32_166 = arith.constant 32 : index
    %c0_167 = arith.constant 0 : index
    %433 = vector.load %arg1[%c32_166, %c0_167] : memref<64x32xf32, #tpu.memory_space<vmem>>, vector<32x4xf32>
    %cst_168 = arith.constant dense<0.000000e+00> : vector<16x4xf32>
    %434 = tpu.matmul %432, %433, %cst_168 {dimension_numbers = #tpu.dot_dimension_numbers<[1], [0], [0], [1], [0, 0, 1, 1], [], []>} : vector<16x32xf32>, vector<32x4xf32>, vector<16x4xf32> -> vector<16x4xf32>
    %c26 = arith.constant 26 : index
    %c0_169 = arith.constant 0 : index
    %435 = vector.load %arg1[%c26, %c0_169] : memref<64x32xf32, #tpu.memory_space<vmem>>, vector<1x4xf32>
    %436 = vector.broadcast %435 : vector<1x4xf32> to vector<16x4xf32>
    %437 = arith.addf %434, %436 : vector<16x4xf32>
    %c0_170 = arith.constant 0 : index
    %c0_171 = arith.constant 0 : index
    %438 = vector.load %arg6[%c0_170, %c0_171] : memref<16x4xf32, #tpu.memory_space<vmem>>, vector<16x4xf32>
    tpu.vector_store %arg6[%c0_170, %c0_171], %437 {strides = array<i32>} : memref<16x4xf32, #tpu.memory_space<vmem>>, vector<16x4xf32>,
    return
  }
}

</mosaic_0001>

<llo_original>
// kernel: continuous_transformer_forward.1
$region0: #{continuous_transformer_forward.1}
  #allocation0 [shape = 'u32[]', space=smem, size = 0x4, offset = 0x4, fixed_abs, tag = 'smem constant byte address 0x4 - core index']
  #allocation1 [shape = 'u32[72,128]{1,0:T(1,128)}', space=vmem, size = 0x9000, scoped, tag = 'internal scratch']
  %s0 = inlined_call_operand.vmem [shape: f32[16,4], index: 0, kind: input, shape index: {}]
  %s1 = inlined_call_operand.vmem [shape: f32[64,32], index: 1, kind: input, shape index: {}]
  %s2 = inlined_call_operand.vmem [shape: f32[2,32,128], index: 2, kind: input, shape index: {}]
  %s3 = inlined_call_operand.vmem [shape: f32[2,3,128], index: 3, kind: input, shape index: {}]
  %s4 = inlined_call_operand.vmem [shape: f32[2,32,128], index: 4, kind: input, shape index: {}]
  %s5 = inlined_call_operand.vmem [shape: f32[2,128,32], index: 5, kind: input, shape index: {}]
  %s6 = inlined_call_operand.vmem [shape: f32[16,4], index: 6, kind: output, shape index: {}]
  %s7 = sld [smem:[#allocation0]]
  $region34: #{continuous_transformer_forward.1} parent=0
    _
  %s9 = ssub.s32 1, %s7
  %s10 = scalar_select 0, %s9, %s7
  // Predicated region
  $region2: #{continuous_transformer_forward.1} parent=0 // pred_check
    _
  $region3: #{continuous_transformer_forward.1} parent=0 // pred_check_branch
    %12 = sbr.rel (0) target = $region5
  $region4: #{continuous_transformer_forward.1} parent=0 // pred_region
    _
  $region5: #{continuous_transformer_forward.1} parent=0 // pred_fallthru
    _
  // Predicated region
  $region6: #{continuous_transformer_forward.1} parent=0 // pred_check
    _
  $region7: #{continuous_transformer_forward.1} parent=0 // pred_check_branch
    %14 = sbr.rel (0) target = $region9
  $region8: #{continuous_transformer_forward.1} parent=0 // pred_region
    _
  $region9: #{continuous_transformer_forward.1} parent=0 // pred_fallthru
    _
  // Predicated region
  $region10: #{continuous_transformer_forward.1} parent=0 // pred_check
    _
  $region11: #{continuous_transformer_forward.1} parent=0 // pred_check_branch
    %16 = sbr.rel (0) target = $region13
  $region12: #{continuous_transformer_forward.1} parent=0 // pred_region
    _
  $region13: #{continuous_transformer_forward.1} parent=0 // pred_fallthru
    _
  // Predicated region
  $region14: #{continuous_transformer_forward.1} parent=0 // pred_check
    _
  $region15: #{continuous_transformer_forward.1} parent=0 // pred_check_branch
    %18 = sbr.rel (0) target = $region17
  $region16: #{continuous_transformer_forward.1} parent=0 // pred_region
    _
  $region17: #{continuous_transformer_forward.1} parent=0 // pred_fallthru
    _
  // Predicated region
  $region18: #{continuous_transformer_forward.1} parent=0 // pred_check
    _
  $region19: #{continuous_transformer_forward.1} parent=0 // pred_check_branch
    %20 = sbr.rel (0) target = $region21
  $region20: #{continuous_transformer_forward.1} parent=0 // pred_region
    _
  $region21: #{continuous_transformer_forward.1} parent=0 // pred_fallthru
    _
  // Predicated region
  $region22: #{continuous_transformer_forward.1} parent=0 // pred_check
    _
  $region23: #{continuous_transformer_forward.1} parent=0 // pred_check_branch
    %22 = sbr.rel (0) target = $region25
  $region24: #{continuous_transformer_forward.1} parent=0 // pred_region
    _
  $region25: #{continuous_transformer_forward.1} parent=0 // pred_fallthru
    _
  %v23 = vld [vmem:[%s0] sm:$0xff]
  %v24 = vld [vmem:[%s0 + $0x8] sm:$0xff]
  %v25 = vld [vmem:[%s1] sm:$0xf]
  %v26 = vld [vmem:[%s1 + $0x8] sm:$0xff]
  %v27 = vld [vmem:[%s1 + $0x10] sm:$0xff]
  %vm28 = vcmask 31744
  %v30 = vsel %vm28, %v23, 0
  %v33 = vsel %vm28, %v24, 0
  %vm35 = vcmask 1043456
  %v37 = vsel %vm35, %v25, 0
  %39 = vmatpush.msra.mxu0 0.0
  %40 = vmatpush.msra.mxu0 0.0
  %41 = vmatpush.msra.mxu0 0.0
  %42 = vmatpush.msra.mxu0 0.0
  %43 = vmatpush.msra.mxu0 0.0
  %44 = vmatpush.msra.mxu0 0.0
  %45 = vmatpush.msra.mxu0 0.0
  %46 = vmatpush.msra.mxu0 0.0
  %47 = vmatpush.msra.mxu0 0.0
  %48 = vmatpush.msra.mxu0 0.0
  %49 = vmatpush.msra.mxu0 0.0
  %50 = vmatpush.msra.mxu0 0.0
  %51 = vmatpush.msra.mxu0 0.0
  %52 = vmatpush.msra.mxu0 0.0
  %53 = vmatpush.msra.mxu0 0.0
  %54 = vmatpush.msra.mxu0 %v37
  %55 = vmatmul.f32.gmra.mxu0 %v30
  %v56 = vpop.f32.mrf.mxu0
  %v57 = vadd.f32 %v26, %v56
  %58 = vmatmul.f32.gmra.mxu0 %v33
  %v59 = vpop.f32.mrf.mxu0
  %v60 = vadd.f32 %v27, %v59
  %61 = vdwg.mxu0
  %v62 = vld [vmem:[%s3] sm:$0x1]
  %vm63 = vcmask 261120
  %v64 = vsel %vm63, %v57, 0.0
  %65 = vadd.xlane.f32.xlu0 %v64
  %v66 = vpop.xlane.xlu0 %65
  %v67 = vsel %vm63, %v60, 0.0
  %68 = vadd.xlane.f32.xlu0 %v67
  %v69 = vpop.xlane.xlu0 %68
  %v70 = vrcp.pop 32.0
  %v71 = vmul.f32 32.0, %v70
  %v72 = vsub.f32 1.0, %v71
  %v73 = vmul.f32 %v70, %v72
  %v74 = vadd.f32 %v70, %v73
  %vm75 = vweird.f32 %v70
  %v76 = vsel %vm75, %v70, %v74
  %v77 = vmul.f32 %v66, %v76
  %v78 = vmul.f32 %v69, %v76
  %v79 = vsub.f32 %v57, %v77
  %v80 = vsub.f32 %v60, %v78
  %v81 = vmul.f32 %v79, %v79
  %v82 = vmul.f32 %v80, %v80
  %v83 = vsel %vm63, %v81, 0.0
  %84 = vadd.xlane.f32.xlu0 %v83
  %v85 = vpop.xlane.xlu0 %84
  %v86 = vsel %vm63, %v82, 0.0
  %87 = vadd.xlane.f32.xlu0 %v86
  %v88 = vpop.xlane.xlu0 %87
  %v89 = vmul.f32 %v85, %v76
  %v90 = vmul.f32 %v88, %v76
  %v91 = vadd.f32 %v89, 1e-05
  %v92 = vadd.f32 %v90, 1e-05
  %v93 = vrsqrt.pop %v91
  %v94 = vmul.f32 %v93, %v91
  %v95 = vmul.f32 %v94, %v93
  %v96 = vmul.f32 0.5, %v95
  %v97 = vsub.f32 1.5, %v96
  %v98 = vmul.f32 %v93, %v97
  %vm99 = vweird.f32 %v91
  %vm100 = vweird.f32 %v93
  %vm101 = vmor %vm99, %vm100
  %v102 = vsel %vm101, %v93, %v98
  %v103 = vrsqrt.pop %v92
  %v104 = vmul.f32 %v103, %v92
  %v105 = vmul.f32 %v104, %v103
  %v106 = vmul.f32 0.5, %v105
  %v107 = vsub.f32 1.5, %v106
  %v108 = vmul.f32 %v103, %v107
  %vm109 = vweird.f32 %v92
  %vm110 = vweird.f32 %v103
  %vm111 = vmor %vm109, %vm110
  %v112 = vsel %vm111, %v103, %v108
  %v113 = vmul.f32 %v79, %v102
  %v114 = vmul.f32 %v80, %v112
  %v115 = vperm.slane %v62, 0
  %v116 = vmul.f32 %v113, %v115
  %v117 = vmul.f32 %v114, %v115
  %119 = vrot.lane.b32.xlu0 %v115, 96
  %v120 = vpop.permute.xlu0 %119
  %v122 = vadd.f32 %v116, %v120
  %v123 = vadd.f32 %v117, %v120
  %v124 = vld [vmem:[%s2] sm:$0xff]
  %v125 = vld [vmem:[%s2 + $0x8] sm:$0xff]
  %v126 = vld [vmem:[%s2 + $0x10] sm:$0xff]
  %v127 = vld [vmem:[%s2 + $0x18] sm:$0xff]
  %v129 = vsel %vm63, %v122, 0
  %v132 = vsel %vm63, %v123, 0
  %134 = vmatpush.msra.mxu0 0.0
  %135 = vmatpush.msra.mxu0 0.0
  %136 = vmatpush.msra.mxu0 0.0
  %137 = vmatpush.msra.mxu0 0.0
  %138 = vmatpush.msra.mxu0 0.0
  %139 = vmatpush.msra.mxu0 0.0
  %140 = vmatpush.msra.mxu0 0.0
  %141 = vmatpush.msra.mxu0 0.0
  %142 = vmatpush.msra.mxu0 0.0
  %143 = vmatpush.msra.mxu0 0.0
  %144 = vmatpush.msra.mxu0 0.0
  %145 = vmatpush.msra.mxu0 0.0
  %146 = vmatpush.msra.mxu0 %v127
  %147 = vmatpush.msra.mxu0 %v126
  %148 = vmatpush.msra.mxu0 %v125
  %149 = vmatpush.msra.mxu0 %v124
  %150 = vmatmul.f32.gmra.mxu0 %v129
  %v151 = vpop.f32.mrf.mxu0
  %v152 = vadd.f32 0.0, %v151
  %153 = vmatmul.f32.gmra.mxu0 %v132
  %v154 = vpop.f32.mrf.mxu0
  %v155 = vadd.f32 0.0, %v154
  %156 = vdwg.mxu0
  %158 = vrot.lane.b32.xlu0 %v152, 96
  %v159 = vpop.permute.xlu0 %158
  %vm160 = vcmask 64512
  %v161 = vsel %vm160, %v152, 0
  %v163 = vsel %vm160, %v159, 0
  %165 = vmatpush.xpose.msra.mxu0 0.0
  %166 = vmatpush.xpose.msra.mxu0 0.0
  %167 = vmatpush.xpose.msra.mxu0 0.0
  %168 = vmatpush.xpose.msra.mxu0 0.0
  %169 = vmatpush.xpose.msra.mxu0 0.0
  %170 = vmatpush.xpose.msra.mxu0 0.0
  %171 = vmatpush.xpose.msra.mxu0 0.0
  %172 = vmatpush.xpose.msra.mxu0 0.0
  %173 = vmatpush.xpose.msra.mxu0 0.0
  %174 = vmatpush.xpose.msra.mxu0 0.0
  %175 = vmatpush.xpose.msra.mxu0 0.0
  %176 = vmatpush.xpose.msra.mxu0 0.0
  %177 = vmatpush.xpose.msra.mxu0 0.0
  %178 = vmatpush.xpose.msra.mxu0 0.0
  %179 = vmatpush.xpose.msra.mxu0 0.0
  %180 = vmatpush.xpose.msra.mxu0 %v163
  %181 = vmatmul.f32.gmra.mxu0 %v161
  %v182 = vpop.f32.mrf.mxu0
  %v183 = vadd.f32 0.0, %v182
  %184 = vdwg.mxu0
  %v185 = vsel %vm160, %v183, -inf
  %186 = vmax.xlane.f32.xlu0 %v185
  %v187 = vpop.xlane.xlu0 %186
  %v188 = vsub.f32 %v183, %v187
  %v189 = vmul.f32 %v188, 1.442695
  %v190 = vpow.pop %v189
  %v191 = vsel %vm160, %v190, 0.0
  %192 = vadd.xlane.f32.xlu0 %v191
  %v193 = vpop.xlane.xlu0 %192
  %v194 = vrcp.pop %v193
  %v195 = vmul.f32 %v193, %v194
  %v196 = vsub.f32 1.0, %v195
  %v197 = vmul.f32 %v194, %v196
  %v198 = vadd.f32 %v194, %v197
  %vm199 = vweird.f32 %v193
  %vm200 = vweird.f32 %v194
  %vm201 = vmor %vm199, %vm200
  %v202 = vsel %vm201, %v194, %v198
  %v203 = vand.u32 2147483647, %v193
  %vm204 = vcmp.eq.f32.partialorder %v203, 8.507059e+37
  %v205 = vand.u32 %v193, 2147483648
  %v206 = vor.u32 1.1754944e-38, %v205
  %v207 = vsel %vm204, %v206, %v202
  %v208 = vmul.f32 %v190, %v207
  %209 = vrot.lane.b32.xlu0 %v152, 64
  %v210 = vpop.permute.xlu0 %209
  %v213 = vsel %vm160, %v208, 0
  %215 = vmatpush.msra.mxu0 0.0
  %216 = vmatpush.msra.mxu0 0.0
  %217 = vmatpush.msra.mxu0 0.0
  %218 = vmatpush.msra.mxu0 0.0
  %219 = vmatpush.msra.mxu0 0.0
  %220 = vmatpush.msra.mxu0 0.0
  %221 = vmatpush.msra.mxu0 0.0
  %222 = vmatpush.msra.mxu0 0.0
  %223 = vmatpush.msra.mxu0 0.0
  %224 = vmatpush.msra.mxu0 0.0
  %225 = vmatpush.msra.mxu0 0.0
  %226 = vmatpush.msra.mxu0 0.0
  %227 = vmatpush.msra.mxu0 0.0
  %228 = vmatpush.msra.mxu0 0.0
  %229 = vmatpush.msra.mxu0 0.0
  %230 = vmatpush.msra.mxu0 %v210
  %231 = vmatmul.f32.gmra.mxu0 %v213
  %v232 = vpop.f32.mrf.mxu0
  %v233 = vadd.f32 0.0, %v232
  %234 = vdwg.mxu0
  %235 = vrot.lane.b32.xlu0 %v152, 120
  %v236 = vpop.permute.xlu0 %235
  %237 = vrot.lane.b32.xlu0 %v152, 88
  %v238 = vpop.permute.xlu0 %237
  %v239 = vsel %vm160, %v236, 0
  %v241 = vsel %vm160, %v238, 0
  %243 = vmatpush.xpose.msra.mxu0 0.0
  %244 = vmatpush.xpose.msra.mxu0 0.0
  %245 = vmatpush.xpose.msra.mxu0 0.0
  %246 = vmatpush.xpose.msra.mxu0 0.0
  %247 = vmatpush.xpose.msra.mxu0 0.0
  %248 = vmatpush.xpose.msra.mxu0 0.0
  %249 = vmatpush.xpose.msra.mxu0 0.0
  %250 = vmatpush.xpose.msra.mxu0 0.0
  %251 = vmatpush.xpose.msra.mxu0 0.0
  %252 = vmatpush.xpose.msra.mxu0 0.0
  %253 = vmatpush.xpose.msra.mxu0 0.0
  %254 = vmatpush.xpose.msra.mxu0 0.0
  %255 = vmatpush.xpose.msra.mxu0 0.0
  %256 = vmatpush.xpose.msra.mxu0 0.0
  %257 = vmatpush.xpose.msra.mxu0 0.0
  %258 = vmatpush.xpose.msra.mxu0 %v241
  %259 = vmatmul.f32.gmra.mxu0 %v239
  %v260 = vpop.f32.mrf.mxu0
  %v261 = vadd.f32 0.0, %v260
  %262 = vdwg.mxu0
  %v263 = vsel %vm160, %v261, -inf
  %264 = vmax.xlane.f32.xlu0 %v263
  %v265 = vpop.xlane.xlu0 %264
  %v266 = vsub.f32 %v261, %v265
  %v267 = vmul.f32 %v266, 1.442695
  %v268 = vpow.pop %v267
  %v269 = vsel %vm160, %v268, 0.0
  %270 = vadd.xlane.f32.xlu0 %v269
  %v271 = vpop.xlane.xlu0 %270
  %v272 = vrcp.pop %v271
  %v273 = vmul.f32 %v271, %v272
  %v274 = vsub.f32 1.0, %v273
  %v275 = vmul.f32 %v272, %v274
  %v276 = vadd.f32 %v272, %v275
  %vm277 = vweird.f32 %v271
  %vm278 = vweird.f32 %v272
  %vm279 = vmor %vm277, %vm278
  %v280 = vsel %vm279, %v272, %v276
  %v281 = vand.u32 2147483647, %v271
  %vm282 = vcmp.eq.f32.partialorder %v281, 8.507059e+37
  %v283 = vand.u32 %v271, 2147483648
  %v284 = vor.u32 1.1754944e-38, %v283
  %v285 = vsel %vm282, %v284, %v280
  %v286 = vmul.f32 %v268, %v285
  %287 = vrot.lane.b32.xlu0 %v152, 56
  %v288 = vpop.permute.xlu0 %287
  %v291 = vsel %vm160, %v286, 0
  %293 = vmatpush.msra.mxu0 0.0
  %294 = vmatpush.msra.mxu0 0.0
  %295 = vmatpush.msra.mxu0 0.0
  %296 = vmatpush.msra.mxu0 0.0
  %297 = vmatpush.msra.mxu0 0.0
  %298 = vmatpush.msra.mxu0 0.0
  %299 = vmatpush.msra.mxu0 0.0
  %300 = vmatpush.msra.mxu0 0.0
  %301 = vmatpush.msra.mxu0 0.0
  %302 = vmatpush.msra.mxu0 0.0
  %303 = vmatpush.msra.mxu0 0.0
  %304 = vmatpush.msra.mxu0 0.0
  %305 = vmatpush.msra.mxu0 0.0
  %306 = vmatpush.msra.mxu0 0.0
  %307 = vmatpush.msra.mxu0 0.0
  %308 = vmatpush.msra.mxu0 %v288
  %309 = vmatmul.f32.gmra.mxu0 %v291
  %v310 = vpop.f32.mrf.mxu0
  %v311 = vadd.f32 0.0, %v310
  %312 = vdwg.mxu0
  %313 = vrot.lane.b32.xlu0 %v152, 112
  %v314 = vpop.permute.xlu0 %313
  %315 = vrot.lane.b32.xlu0 %v152, 80
  %v316 = vpop.permute.xlu0 %315
  %v317 = vsel %vm160, %v314, 0
  %v319 = vsel %vm160, %v316, 0
  %321 = vmatpush.xpose.msra.mxu0 0.0
  %322 = vmatpush.xpose.msra.mxu0 0.0
  %323 = vmatpush.xpose.msra.mxu0 0.0
  %324 = vmatpush.xpose.msra.mxu0 0.0
  %325 = vmatpush.xpose.msra.mxu0 0.0
  %326 = vmatpush.xpose.msra.mxu0 0.0
  %327 = vmatpush.xpose.msra.mxu0 0.0
  %328 = vmatpush.xpose.msra.mxu0 0.0
  %329 = vmatpush.xpose.msra.mxu0 0.0
  %330 = vmatpush.xpose.msra.mxu0 0.0
  %331 = vmatpush.xpose.msra.mxu0 0.0
  %332 = vmatpush.xpose.msra.mxu0 0.0
  %333 = vmatpush.xpose.msra.mxu0 0.0
  %334 = vmatpush.xpose.msra.mxu0 0.0
  %335 = vmatpush.xpose.msra.mxu0 0.0
  %336 = vmatpush.xpose.msra.mxu0 %v319
  %337 = vmatmul.f32.gmra.mxu0 %v317
  %v338 = vpop.f32.mrf.mxu0
  %v339 = vadd.f32 0.0, %v338
  %340 = vdwg.mxu0
  %v341 = vsel %vm160, %v339, -inf
  %342 = vmax.xlane.f32.xlu0 %v341
  %v343 = vpop.xlane.xlu0 %342
  %v344 = vsub.f32 %v339, %v343
  %v345 = vmul.f32 %v344, 1.442695
  %v346 = vpow.pop %v345
  %v347 = vsel %vm160, %v346, 0.0
  %348 = vadd.xlane.f32.xlu0 %v347
  %v349 = vpop.xlane.xlu0 %348
  %v350 = vrcp.pop %v349
  %v351 = vmul.f32 %v349, %v350
  %v352 = vsub.f32 1.0, %v351
  %v353 = vmul.f32 %v350, %v352
  %v354 = vadd.f32 %v350, %v353
  %vm355 = vweird.f32 %v349
  %vm356 = vweird.f32 %v350
  %vm357 = vmor %vm355, %vm356
  %v358 = vsel %vm357, %v350, %v354
  %v359 = vand.u32 2147483647, %v349
  %vm360 = vcmp.eq.f32.partialorder %v359, 8.507059e+37
  %v361 = vand.u32 %v349, 2147483648
  %v362 = vor.u32 1.1754944e-38, %v361
  %v363 = vsel %vm360, %v362, %v358
  %v364 = vmul.f32 %v346, %v363
  %365 = vrot.lane.b32.xlu0 %v152, 48
  %v366 = vpop.permute.xlu0 %365
  %v369 = vsel %vm160, %v364, 0
  %371 = vmatpush.msra.mxu0 0.0
  %372 = vmatpush.msra.mxu0 0.0
  %373 = vmatpush.msra.mxu0 0.0
  %374 = vmatpush.msra.mxu0 0.0
  %375 = vmatpush.msra.mxu0 0.0
  %376 = vmatpush.msra.mxu0 0.0
  %377 = vmatpush.msra.mxu0 0.0
  %378 = vmatpush.msra.mxu0 0.0
  %379 = vmatpush.msra.mxu0 0.0
  %380 = vmatpush.msra.mxu0 0.0
  %381 = vmatpush.msra.mxu0 0.0
  %382 = vmatpush.msra.mxu0 0.0
  %383 = vmatpush.msra.mxu0 0.0
  %384 = vmatpush.msra.mxu0 0.0
  %385 = vmatpush.msra.mxu0 0.0
  %386 = vmatpush.msra.mxu0 %v366
  %387 = vmatmul.f32.gmra.mxu0 %v369
  %v388 = vpop.f32.mrf.mxu0
  %v389 = vadd.f32 0.0, %v388
  %390 = vdwg.mxu0
  %391 = vrot.lane.b32.xlu0 %v152, 104
  %v392 = vpop.permute.xlu0 %391
  %393 = vrot.lane.b32.xlu0 %v152, 72
  %v394 = vpop.permute.xlu0 %393
  %v395 = vsel %vm160, %v392, 0
  %v397 = vsel %vm160, %v394, 0
  %399 = vmatpush.xpose.msra.mxu0 0.0
  %400 = vmatpush.xpose.msra.mxu0 0.0
  %401 = vmatpush.xpose.msra.mxu0 0.0
  %402 = vmatpush.xpose.msra.mxu0 0.0
  %403 = vmatpush.xpose.msra.mxu0 0.0
  %404 = vmatpush.xpose.msra.mxu0 0.0
  %405 = vmatpush.xpose.msra.mxu0 0.0
  %406 = vmatpush.xpose.msra.mxu0 0.0
  %407 = vmatpush.xpose.msra.mxu0 0.0
  %408 = vmatpush.xpose.msra.mxu0 0.0
  %409 = vmatpush.xpose.msra.mxu0 0.0
  %410 = vmatpush.xpose.msra.mxu0 0.0
  %411 = vmatpush.xpose.msra.mxu0 0.0
  %412 = vmatpush.xpose.msra.mxu0 0.0
  %413 = vmatpush.xpose.msra.mxu0 0.0
  %414 = vmatpush.xpose.msra.mxu0 %v397
  %415 = vmatmul.f32.gmra.mxu0 %v395
  %v416 = vpop.f32.mrf.mxu0
  %v417 = vadd.f32 0.0, %v416
  %418 = vdwg.mxu0
  %v419 = vsel %vm160, %v417, -inf
  %420 = vmax.xlane.f32.xlu0 %v419
  %v421 = vpop.xlane.xlu0 %420
  %v422 = vsub.f32 %v417, %v421
  %v423 = vmul.f32 %v422, 1.442695
  %v424 = vpow.pop %v423
  %v425 = vsel %vm160, %v424, 0.0
  %426 = vadd.xlane.f32.xlu0 %v425
  %v427 = vpop.xlane.xlu0 %426
  %v428 = vrcp.pop %v427
  %v429 = vmul.f32 %v427, %v428
  %v430 = vsub.f32 1.0, %v429
  %v431 = vmul.f32 %v428, %v430
  %v432 = vadd.f32 %v428, %v431
  %vm433 = vweird.f32 %v427
  %vm434 = vweird.f32 %v428
  %vm435 = vmor %vm433, %vm434
  %v436 = vsel %vm435, %v428, %v432
  %v437 = vand.u32 2147483647, %v427
  %vm438 = vcmp.eq.f32.partialorder %v437, 8.507059e+37
  %v439 = vand.u32 %v427, 2147483648
  %v440 = vor.u32 1.1754944e-38, %v439
  %v441 = vsel %vm438, %v440, %v436
  %v442 = vmul.f32 %v424, %v441
  %443 = vrot.lane.b32.xlu0 %v152, 40
  %v444 = vpop.permute.xlu0 %443
  %v447 = vsel %vm160, %v442, 0
  %449 = vmatpush.msra.mxu0 0.0
  %450 = vmatpush.msra.mxu0 0.0
  %451 = vmatpush.msra.mxu0 0.0
  %452 = vmatpush.msra.mxu0 0.0
  %453 = vmatpush.msra.mxu0 0.0
  %454 = vmatpush.msra.mxu0 0.0
  %455 = vmatpush.msra.mxu0 0.0
  %456 = vmatpush.msra.mxu0 0.0
  %457 = vmatpush.msra.mxu0 0.0
  %458 = vmatpush.msra.mxu0 0.0
  %459 = vmatpush.msra.mxu0 0.0
  %460 = vmatpush.msra.mxu0 0.0
  %461 = vmatpush.msra.mxu0 0.0
  %462 = vmatpush.msra.mxu0 0.0
  %463 = vmatpush.msra.mxu0 0.0
  %464 = vmatpush.msra.mxu0 %v444
  %465 = vmatmul.f32.gmra.mxu0 %v447
  %v466 = vpop.f32.mrf.mxu0
  %v467 = vadd.f32 0.0, %v466
  %468 = vdwg.mxu0
  %470 = vrot.lane.b32.xlu0 %v311, 8
  %v471 = vpop.permute.xlu0 %470
  %474 = vrot.lane.b32.xlu0 %v389, 16
  %v475 = vpop.permute.xlu0 %474
  %478 = vrot.lane.b32.xlu0 %v467, 24
  %v479 = vpop.permute.xlu0 %478
  %v481 = vsel %vm160, %v233, %v471
  %vm482 = vcmask 130048
  %v483 = vsel %vm482, %v481, %v475
  %vm484 = vcmask 195584
  %v485 = vsel %vm484, %v483, %v479
  %487 = vrot.lane.b32.xlu0 %v155, 96
  %v488 = vpop.permute.xlu0 %487
  %v489 = vsel %vm160, %v155, 0
  %v491 = vsel %vm160, %v488, 0
  %493 = vmatpush.xpose.msra.mxu0 0.0
  %494 = vmatpush.xpose.msra.mxu0 0.0
  %495 = vmatpush.xpose.msra.mxu0 0.0
  %496 = vmatpush.xpose.msra.mxu0 0.0
  %497 = vmatpush.xpose.msra.mxu0 0.0
  %498 = vmatpush.xpose.msra.mxu0 0.0
  %499 = vmatpush.xpose.msra.mxu0 0.0
  %500 = vmatpush.xpose.msra.mxu0 0.0
  %501 = vmatpush.xpose.msra.mxu0 0.0
  %502 = vmatpush.xpose.msra.mxu0 0.0
  %503 = vmatpush.xpose.msra.mxu0 0.0
  %504 = vmatpush.xpose.msra.mxu0 0.0
  %505 = vmatpush.xpose.msra.mxu0 0.0
  %506 = vmatpush.xpose.msra.mxu0 0.0
  %507 = vmatpush.xpose.msra.mxu0 0.0
  %508 = vmatpush.xpose.msra.mxu0 %v491
  %509 = vmatmul.f32.gmra.mxu0 %v489
  %v510 = vpop.f32.mrf.mxu0
  %v511 = vadd.f32 0.0, %v510
  %512 = vdwg.mxu0
  %v513 = vsel %vm160, %v511, -inf
  %514 = vmax.xlane.f32.xlu0 %v513
  %v515 = vpop.xlane.xlu0 %514
  %v516 = vsub.f32 %v511, %v515
  %v517 = vmul.f32 %v516, 1.442695
  %v518 = vpow.pop %v517
  %v519 = vsel %vm160, %v518, 0.0
  %520 = vadd.xlane.f32.xlu0 %v519
  %v521 = vpop.xlane.xlu0 %520
  %v522 = vrcp.pop %v521
  %v523 = vmul.f32 %v521, %v522
  %v524 = vsub.f32 1.0, %v523
  %v525 = vmul.f32 %v522, %v524
  %v526 = vadd.f32 %v522, %v525
  %vm527 = vweird.f32 %v521
  %vm528 = vweird.f32 %v522
  %vm529 = vmor %vm527, %vm528
  %v530 = vsel %vm529, %v522, %v526
  %v531 = vand.u32 2147483647, %v521
  %vm532 = vcmp.eq.f32.partialorder %v531, 8.507059e+37
  %v533 = vand.u32 %v521, 2147483648
  %v534 = vor.u32 1.1754944e-38, %v533
  %v535 = vsel %vm532, %v534, %v530
  %v536 = vmul.f32 %v518, %v535
  %537 = vrot.lane.b32.xlu0 %v155, 64
  %v538 = vpop.permute.xlu0 %537
  %v541 = vsel %vm160, %v536, 0
  %543 = vmatpush.msra.mxu0 0.0
  %544 = vmatpush.msra.mxu0 0.0
  %545 = vmatpush.msra.mxu0 0.0
  %546 = vmatpush.msra.mxu0 0.0
  %547 = vmatpush.msra.mxu0 0.0
  %548 = vmatpush.msra.mxu0 0.0
  %549 = vmatpush.msra.mxu0 0.0
  %550 = vmatpush.msra.mxu0 0.0
  %551 = vmatpush.msra.mxu0 0.0
  %552 = vmatpush.msra.mxu0 0.0
  %553 = vmatpush.msra.mxu0 0.0
  %554 = vmatpush.msra.mxu0 0.0
  %555 = vmatpush.msra.mxu0 0.0
  %556 = vmatpush.msra.mxu0 0.0
  %557 = vmatpush.msra.mxu0 0.0
  %558 = vmatpush.msra.mxu0 %v538
  %559 = vmatmul.f32.gmra.mxu0 %v541
  %v560 = vpop.f32.mrf.mxu0
  %v561 = vadd.f32 0.0, %v560
  %562 = vdwg.mxu0
  %563 = vrot.lane.b32.xlu0 %v155, 120
  %v564 = vpop.permute.xlu0 %563
  %565 = vrot.lane.b32.xlu0 %v155, 88
  %v566 = vpop.permute.xlu0 %565
  %v567 = vsel %vm160, %v564, 0
  %v569 = vsel %vm160, %v566, 0
  %571 = vmatpush.xpose.msra.mxu0 0.0
  %572 = vmatpush.xpose.msra.mxu0 0.0
  %573 = vmatpush.xpose.msra.mxu0 0.0
  %574 = vmatpush.xpose.msra.mxu0 0.0
  %575 = vmatpush.xpose.msra.mxu0 0.0
  %576 = vmatpush.xpose.msra.mxu0 0.0
  %577 = vmatpush.xpose.msra.mxu0 0.0
  %578 = vmatpush.xpose.msra.mxu0 0.0
  %579 = vmatpush.xpose.msra.mxu0 0.0
  %580 = vmatpush.xpose.msra.mxu0 0.0
  %581 = vmatpush.xpose.msra.mxu0 0.0
  %582 = vmatpush.xpose.msra.mxu0 0.0
  %583 = vmatpush.xpose.msra.mxu0 0.0
  %584 = vmatpush.xpose.msra.mxu0 0.0
  %585 = vmatpush.xpose.msra.mxu0 0.0
  %586 = vmatpush.xpose.msra.mxu0 %v569
  %587 = vmatmul.f32.gmra.mxu0 %v567
  %v588 = vpop.f32.mrf.mxu0
  %v589 = vadd.f32 0.0, %v588
  %590 = vdwg.mxu0
  %v591 = vsel %vm160, %v589, -inf
  %592 = vmax.xlane.f32.xlu0 %v591
  %v593 = vpop.xlane.xlu0 %592
  %v594 = vsub.f32 %v589, %v593
  %v595 = vmul.f32 %v594, 1.442695
  %v596 = vpow.pop %v595
  %v597 = vsel %vm160, %v596, 0.0
  %598 = vadd.xlane.f32.xlu0 %v597
  %v599 = vpop.xlane.xlu0 %598
  %v600 = vrcp.pop %v599
  %v601 = vmul.f32 %v599, %v600
  %v602 = vsub.f32 1.0, %v601
  %v603 = vmul.f32 %v600, %v602
  %v604 = vadd.f32 %v600, %v603
  %vm605 = vweird.f32 %v599
  %vm606 = vweird.f32 %v600
  %vm607 = vmor %vm605, %vm606
  %v608 = vsel %vm607, %v600, %v604
  %v609 = vand.u32 2147483647, %v599
  %vm610 = vcmp.eq.f32.partialorder %v609, 8.507059e+37
  %v611 = vand.u32 %v599, 2147483648
  %v612 = vor.u32 1.1754944e-38, %v611
  %v613 = vsel %vm610, %v612, %v608
  %v614 = vmul.f32 %v596, %v613
  %615 = vrot.lane.b32.xlu0 %v155, 56
  %v616 = vpop.permute.xlu0 %615
  %v619 = vsel %vm160, %v614, 0
  %621 = vmatpush.msra.mxu0 0.0
  %622 = vmatpush.msra.mxu0 0.0
  %623 = vmatpush.msra.mxu0 0.0
  %624 = vmatpush.msra.mxu0 0.0
  %625 = vmatpush.msra.mxu0 0.0
  %626 = vmatpush.msra.mxu0 0.0
  %627 = vmatpush.msra.mxu0 0.0
  %628 = vmatpush.msra.mxu0 0.0
  %629 = vmatpush.msra.mxu0 0.0
  %630 = vmatpush.msra.mxu0 0.0
  %631 = vmatpush.msra.mxu0 0.0
  %632 = vmatpush.msra.mxu0 0.0
  %633 = vmatpush.msra.mxu0 0.0
  %634 = vmatpush.msra.mxu0 0.0
  %635 = vmatpush.msra.mxu0 0.0
  %636 = vmatpush.msra.mxu0 %v616
  %637 = vmatmul.f32.gmra.mxu0 %v619
  %v638 = vpop.f32.mrf.mxu0
  %v639 = vadd.f32 0.0, %v638
  %640 = vdwg.mxu0
  %641 = vrot.lane.b32.xlu0 %v155, 112
  %v642 = vpop.permute.xlu0 %641
  %643 = vrot.lane.b32.xlu0 %v155, 80
  %v644 = vpop.permute.xlu0 %643
  %v645 = vsel %vm160, %v642, 0
  %v647 = vsel %vm160, %v644, 0
  %649 = vmatpush.xpose.msra.mxu0 0.0
  %650 = vmatpush.xpose.msra.mxu0 0.0
  %651 = vmatpush.xpose.msra.mxu0 0.0
  %652 = vmatpush.xpose.msra.mxu0 0.0
  %653 = vmatpush.xpose.msra.mxu0 0.0
  %654 = vmatpush.xpose.msra.mxu0 0.0
  %655 = vmatpush.xpose.msra.mxu0 0.0
  %656 = vmatpush.xpose.msra.mxu0 0.0
  %657 = vmatpush.xpose.msra.mxu0 0.0
  %658 = vmatpush.xpose.msra.mxu0 0.0
  %659 = vmatpush.xpose.msra.mxu0 0.0
  %660 = vmatpush.xpose.msra.mxu0 0.0
  %661 = vmatpush.xpose.msra.mxu0 0.0
  %662 = vmatpush.xpose.msra.mxu0 0.0
  %663 = vmatpush.xpose.msra.mxu0 0.0
  %664 = vmatpush.xpose.msra.mxu0 %v647
  %665 = vmatmul.f32.gmra.mxu0 %v645
  %v666 = vpop.f32.mrf.mxu0
  %v667 = vadd.f32 0.0, %v666
  %668 = vdwg.mxu0
  %v669 = vsel %vm160, %v667, -inf
  %670 = vmax.xlane.f32.xlu0 %v669
  %v671 = vpop.xlane.xlu0 %670
  %v672 = vsub.f32 %v667, %v671
  %v673 = vmul.f32 %v672, 1.442695
  %v674 = vpow.pop %v673
  %v675 = vsel %vm160, %v674, 0.0
  %676 = vadd.xlane.f32.xlu0 %v675
  %v677 = vpop.xlane.xlu0 %676
  %v678 = vrcp.pop %v677
  %v679 = vmul.f32 %v677, %v678
  %v680 = vsub.f32 1.0, %v679
  %v681 = vmul.f32 %v678, %v680
  %v682 = vadd.f32 %v678, %v681
  %vm683 = vweird.f32 %v677
  %vm684 = vweird.f32 %v678
  %vm685 = vmor %vm683, %vm684
  %v686 = vsel %vm685, %v678, %v682
  %v687 = vand.u32 2147483647, %v677
  %vm688 = vcmp.eq.f32.partialorder %v687, 8.507059e+37
  %v689 = vand.u32 %v677, 2147483648
  %v690 = vor.u32 1.1754944e-38, %v689
  %v691 = vsel %vm688, %v690, %v686
  %v692 = vmul.f32 %v674, %v691
  %693 = vrot.lane.b32.xlu0 %v155, 48
  %v694 = vpop.permute.xlu0 %693
  %v697 = vsel %vm160, %v692, 0
  %699 = vmatpush.msra.mxu0 0.0
  %700 = vmatpush.msra.mxu0 0.0
  %701 = vmatpush.msra.mxu0 0.0
  %702 = vmatpush.msra.mxu0 0.0
  %703 = vmatpush.msra.mxu0 0.0
  %704 = vmatpush.msra.mxu0 0.0
  %705 = vmatpush.msra.mxu0 0.0
  %706 = vmatpush.msra.mxu0 0.0
  %707 = vmatpush.msra.mxu0 0.0
  %708 = vmatpush.msra.mxu0 0.0
  %709 = vmatpush.msra.mxu0 0.0
  %710 = vmatpush.msra.mxu0 0.0
  %711 = vmatpush.msra.mxu0 0.0
  %712 = vmatpush.msra.mxu0 0.0
  %713 = vmatpush.msra.mxu0 0.0
  %714 = vmatpush.msra.mxu0 %v694
  %715 = vmatmul.f32.gmra.mxu0 %v697
  %v716 = vpop.f32.mrf.mxu0
  %v717 = vadd.f32 0.0, %v716
  %718 = vdwg.mxu0
  %719 = vrot.lane.b32.xlu0 %v155, 104
  %v720 = vpop.permute.xlu0 %719
  %721 = vrot.lane.b32.xlu0 %v155, 72
  %v722 = vpop.permute.xlu0 %721
  %v723 = vsel %vm160, %v720, 0
  %v725 = vsel %vm160, %v722, 0
  %727 = vmatpush.xpose.msra.mxu0 0.0
  %728 = vmatpush.xpose.msra.mxu0 0.0
  %729 = vmatpush.xpose.msra.mxu0 0.0
  %730 = vmatpush.xpose.msra.mxu0 0.0
  %731 = vmatpush.xpose.msra.mxu0 0.0
  %732 = vmatpush.xpose.msra.mxu0 0.0
  %733 = vmatpush.xpose.msra.mxu0 0.0
  %734 = vmatpush.xpose.msra.mxu0 0.0
  %735 = vmatpush.xpose.msra.mxu0 0.0
  %736 = vmatpush.xpose.msra.mxu0 0.0
  %737 = vmatpush.xpose.msra.mxu0 0.0
  %738 = vmatpush.xpose.msra.mxu0 0.0
  %739 = vmatpush.xpose.msra.mxu0 0.0
  %740 = vmatpush.xpose.msra.mxu0 0.0
  %741 = vmatpush.xpose.msra.mxu0 0.0
  %742 = vmatpush.xpose.msra.mxu0 %v725
  %743 = vmatmul.f32.gmra.mxu0 %v723
  %v744 = vpop.f32.mrf.mxu0
  %v745 = vadd.f32 0.0, %v744
  %746 = vdwg.mxu0
  %v747 = vsel %vm160, %v745, -inf
  %748 = vmax.xlane.f32.xlu0 %v747
  %v749 = vpop.xlane.xlu0 %748
  %v750 = vsub.f32 %v745, %v749
  %v751 = vmul.f32 %v750, 1.442695
  %v752 = vpow.pop %v751
  %v753 = vsel %vm160, %v752, 0.0
  %754 = vadd.xlane.f32.xlu0 %v753
  %v755 = vpop.xlane.xlu0 %754
  %v756 = vrcp.pop %v755
  %v757 = vmul.f32 %v755, %v756
  %v758 = vsub.f32 1.0, %v757
  %v759 = vmul.f32 %v756, %v758
  %v760 = vadd.f32 %v756, %v759
  %vm761 = vweird.f32 %v755
  %vm762 = vweird.f32 %v756
  %vm763 = vmor %vm761, %vm762
  %v764 = vsel %vm763, %v756, %v760
  %v765 = vand.u32 2147483647, %v755
  %vm766 = vcmp.eq.f32.partialorder %v765, 8.507059e+37
  %v767 = vand.u32 %v755, 2147483648
  %v768 = vor.u32 1.1754944e-38, %v767
  %v769 = vsel %vm766, %v768, %v764
  %v770 = vmul.f32 %v752, %v769
  %771 = vrot.lane.b32.xlu0 %v155, 40
  %v772 = vpop.permute.xlu0 %771
  %v775 = vsel %vm160, %v770, 0
  %777 = vmatpush.msra.mxu0 0.0
  %778 = vmatpush.msra.mxu0 0.0
  %779 = vmatpush.msra.mxu0 0.0
  %780 = vmatpush.msra.mxu0 0.0
  %781 = vmatpush.msra.mxu0 0.0
  %782 = vmatpush.msra.mxu0 0.0
  %783 = vmatpush.msra.mxu0 0.0
  %784 = vmatpush.msra.mxu0 0.0
  %785 = vmatpush.msra.mxu0 0.0
  %786 = vmatpush.msra.mxu0 0.0
  %787 = vmatpush.msra.mxu0 0.0
  %788 = vmatpush.msra.mxu0 0.0
  %789 = vmatpush.msra.mxu0 0.0
  %790 = vmatpush.msra.mxu0 0.0
  %791 = vmatpush.msra.mxu0 0.0
  %792 = vmatpush.msra.mxu0 %v772
  %793 = vmatmul.f32.gmra.mxu0 %v775
  %v794 = vpop.f32.mrf.mxu0
  %v795 = vadd.f32 0.0, %v794
  %796 = vdwg.mxu0
  %798 = vrot.lane.b32.xlu0 %v639, 8
  %v799 = vpop.permute.xlu0 %798
  %802 = vrot.lane.b32.xlu0 %v717, 16
  %v803 = vpop.permute.xlu0 %802
  %806 = vrot.lane.b32.xlu0 %v795, 24
  %v807 = vpop.permute.xlu0 %806
  %v809 = vsel %vm160, %v561, %v799
  %v810 = vsel %vm482, %v809, %v803
  %v811 = vsel %vm484, %v810, %v807
  %816 = vrot.lane.b32.xlu0 %v124, 32
  %v817 = vpop.permute.xlu0 %816
  %818 = vrot.lane.b32.xlu0 %v125, 32
  %v819 = vpop.permute.xlu0 %818
  %820 = vrot.lane.b32.xlu0 %v126, 32
  %v821 = vpop.permute.xlu0 %820
  %822 = vrot.lane.b32.xlu0 %v127, 32
  %v823 = vpop.permute.xlu0 %822
  %v829 = vsel %vm63, %v485, 0
  %v832 = vsel %vm63, %v811, 0
  %834 = vmatpush.msra.mxu0 0.0
  %835 = vmatpush.msra.mxu0 0.0
  %836 = vmatpush.msra.mxu0 0.0
  %837 = vmatpush.msra.mxu0 0.0
  %838 = vmatpush.msra.mxu0 0.0
  %839 = vmatpush.msra.mxu0 0.0
  %840 = vmatpush.msra.mxu0 0.0
  %841 = vmatpush.msra.mxu0 0.0
  %842 = vmatpush.msra.mxu0 0.0
  %843 = vmatpush.msra.mxu0 0.0
  %844 = vmatpush.msra.mxu0 0.0
  %845 = vmatpush.msra.mxu0 0.0
  %846 = vmatpush.msra.mxu0 %v823
  %847 = vmatpush.msra.mxu0 %v821
  %848 = vmatpush.msra.mxu0 %v819
  %849 = vmatpush.msra.mxu0 %v817
  %850 = vmatmul.f32.gmra.mxu0 %v829
  %v851 = vpop.f32.mrf.mxu0
  %v852 = vadd.f32 0.0, %v851
  %853 = vmatmul.f32.gmra.mxu0 %v832
  %v854 = vpop.f32.mrf.mxu0
  %v855 = vadd.f32 0.0, %v854
  %856 = vdwg.mxu0
  %v857 = vadd.f32 %v57, %v852
  %v858 = vadd.f32 %v60, %v855
  %v859 = vsel %vm63, %v857, 0.0
  %860 = vadd.xlane.f32.xlu0 %v859
  %v861 = vpop.xlane.xlu0 %860
  %v862 = vsel %vm63, %v858, 0.0
  %863 = vadd.xlane.f32.xlu0 %v862
  %v864 = vpop.xlane.xlu0 %863
  %v865 = vmul.f32 %v861, %v76
  %v866 = vmul.f32 %v864, %v76
  %v867 = vsub.f32 %v857, %v865
  %v868 = vsub.f32 %v858, %v866
  %v869 = vmul.f32 %v867, %v867
  %v870 = vmul.f32 %v868, %v868
  %v871 = vsel %vm63, %v869, 0.0
  %872 = vadd.xlane.f32.xlu0 %v871
  %v873 = vpop.xlane.xlu0 %872
  %v874 = vsel %vm63, %v870, 0.0
  %875 = vadd.xlane.f32.xlu0 %v874
  %v876 = vpop.xlane.xlu0 %875
  %v877 = vmul.f32 %v873, %v76
  %v878 = vmul.f32 %v876, %v76
  %v879 = vadd.f32 %v877, 1e-05
  %v880 = vadd.f32 %v878, 1e-05
  %v881 = vrsqrt.pop %v879
  %v882 = vmul.f32 %v881, %v879
  %v883 = vmul.f32 %v882, %v881
  %v884 = vmul.f32 0.5, %v883
  %v885 = vsub.f32 1.5, %v884
  %v886 = vmul.f32 %v881, %v885
  %vm887 = vweird.f32 %v879
  %vm888 = vweird.f32 %v881
  %vm889 = vmor %vm887, %vm888
  %v890 = vsel %vm889, %v881, %v886
  %v891 = vrsqrt.pop %v880
  %v892 = vmul.f32 %v891, %v880
  %v893 = vmul.f32 %v892, %v891
  %v894 = vmul.f32 0.5, %v893
  %v895 = vsub.f32 1.5, %v894
  %v896 = vmul.f32 %v891, %v895
  %vm897 = vweird.f32 %v880
  %vm898 = vweird.f32 %v891
  %vm899 = vmor %vm897, %vm898
  %v900 = vsel %vm899, %v891, %v896
  %v901 = vmul.f32 %v867, %v890
  %v902 = vmul.f32 %v868, %v900
  %903 = vrot.lane.b32.xlu0 %v115, 64
  %v904 = vpop.permute.xlu0 %903
  %v906 = vmul.f32 %v901, %v904
  %v907 = vmul.f32 %v902, %v904
  %908 = vrot.lane.b32.xlu0 %v115, 32
  %v909 = vpop.permute.xlu0 %908
  %v911 = vadd.f32 %v906, %v909
  %v912 = vadd.f32 %v907, %v909
  %v913 = vld [vmem:[%s4] sm:$0xff]
  %v914 = vld [vmem:[%s4 + $0x8] sm:$0xff]
  %v915 = vld [vmem:[%s4 + $0x10] sm:$0xff]
  %v916 = vld [vmem:[%s4 + $0x18] sm:$0xff]
  %v917 = vld [vmem:[%s3 + $0x1] sm:$0x1]
  %v918 = vperm.slane %v917, 0
  %v920 = vsel %vm63, %v911, 0
  %v923 = vsel %vm63, %v912, 0
  %925 = vmatpush.msra.mxu0 0.0
  %926 = vmatpush.msra.mxu0 0.0
  %927 = vmatpush.msra.mxu0 0.0
  %928 = vmatpush.msra.mxu0 0.0
  %929 = vmatpush.msra.mxu0 0.0
  %930 = vmatpush.msra.mxu0 0.0
  %931 = vmatpush.msra.mxu0 0.0
  %932 = vmatpush.msra.mxu0 0.0
  %933 = vmatpush.msra.mxu0 0.0
  %934 = vmatpush.msra.mxu0 0.0
  %935 = vmatpush.msra.mxu0 0.0
  %936 = vmatpush.msra.mxu0 0.0
  %937 = vmatpush.msra.mxu0 %v916
  %938 = vmatpush.msra.mxu0 %v915
  %939 = vmatpush.msra.mxu0 %v914
  %940 = vmatpush.msra.mxu0 %v913
  %941 = vmatmul.f32.gmra.mxu0 %v920
  %v942 = vpop.f32.mrf.mxu0
  %v943 = vadd.f32 %v918, %v942
  %944 = vmatmul.f32.gmra.mxu0 %v923
  %v945 = vpop.f32.mrf.mxu0
  %v946 = vadd.f32 %v918, %v945
  %947 = vdwg.mxu0
  %v948 = vmul.f32 %v943, 0.5
  %v949 = vmul.f32 %v946, 0.5
  %v950 = vmul.f32 %v943, 0.044715
  %v951 = vmul.f32 %v946, 0.044715
  %v952 = vmul.f32 %v950, %v943
  %v953 = vmul.f32 %v951, %v946
  %v954 = vmul.f32 %v952, %v943
  %v955 = vmul.f32 %v953, %v946
  %v956 = vadd.f32 %v943, %v954
  %v957 = vadd.f32 %v946, %v955
  %v958 = vmul.f32 %v956, 0.7978846
  %v959 = vmul.f32 %v957, 0.7978846
  %v960 = vtanh.pop %v958
  %v961 = vtanh.pop %v959
  %v962 = vadd.f32 %v960, 1.0
  %v963 = vadd.f32 %v961, 1.0
  %v964 = vmul.f32 %v948, %v962
  %v965 = vmul.f32 %v949, %v963
  %v966 = vld [vmem:[%s5] sm:$0xff]
  %v967 = vld [vmem:[%s5 + $0x8] sm:$0xff]
  %v968 = vld [vmem:[%s5 + $0x10] sm:$0xff]
  %v969 = vld [vmem:[%s5 + $0x18] sm:$0xff]
  %v970 = vld [vmem:[%s5 + $0x20] sm:$0xff]
  %v971 = vld [vmem:[%s5 + $0x28] sm:$0xff]
  %v972 = vld [vmem:[%s5 + $0x30] sm:$0xff]
  %v973 = vld [vmem:[%s5 + $0x38] sm:$0xff]
  %v974 = vld [vmem:[%s5 + $0x40] sm:$0xff]
  %v975 = vld [vmem:[%s5 + $0x48] sm:$0xff]
  %v976 = vld [vmem:[%s5 + $0x50] sm:$0xff]
  %v977 = vld [vmem:[%s5 + $0x58] sm:$0xff]
  %v978 = vld [vmem:[%s5 + $0x60] sm:$0xff]
  %v979 = vld [vmem:[%s5 + $0x68] sm:$0xff]
  %v980 = vld [vmem:[%s5 + $0x70] sm:$0xff]
  %v981 = vld [vmem:[%s5 + $0x78] sm:$0xff]
  %v982 = vld [vmem:[%s3 + $0x2] sm:$0x1]
  %v983 = vperm.slane %v982, 0
  %984 = vmatpush.msra.mxu0 %v981
  %985 = vmatpush.msra.mxu0 %v980
  %986 = vmatpush.msra.mxu0 %v979
  %987 = vmatpush.msra.mxu0 %v978
  %988 = vmatpush.msra.mxu0 %v977
  %989 = vmatpush.msra.mxu0 %v976
  %990 = vmatpush.msra.mxu0 %v975
  %991 = vmatpush.msra.mxu0 %v974
  %992 = vmatpush.msra.mxu0 %v973
  %993 = vmatpush.msra.mxu0 %v972
  %994 = vmatpush.msra.mxu0 %v971
  %995 = vmatpush.msra.mxu0 %v970
  %996 = vmatpush.msra.mxu0 %v969
  %997 = vmatpush.msra.mxu0 %v968
  %998 = vmatpush.msra.mxu0 %v967
  %999 = vmatpush.msra.mxu0 %v966
  %1000 = vmatmul.f32.gmra.mxu0 %v964
  %v1001 = vpop.f32.mrf.mxu0
  %v1002 = vadd.f32 %v983, %v1001
  %1003 = vmatmul.f32.gmra.mxu0 %v965
  %v1004 = vpop.f32.mrf.mxu0
  %v1005 = vadd.f32 %v983, %v1004
  %1006 = vdwg.mxu0
  %v1007 = vadd.f32 %v857, %v1002
  %v1008 = vadd.f32 %v858, %v1005
  %s1009 = scalar_lea.vmem %s3, 4
  %v1010 = vld [vmem:[%s1009] sm:$0x1]
  %v1011 = vsel %vm63, %v1007, 0.0
  %1012 = vadd.xlane.f32.xlu0 %v1011
  %v1013 = vpop.xlane.xlu0 %1012
  %v1014 = vsel %vm63, %v1008, 0.0
  %1015 = vadd.xlane.f32.xlu0 %v1014
  %v1016 = vpop.xlane.xlu0 %1015
  %v1017 = vmul.f32 %v1013, %v76
  %v1018 = vmul.f32 %v1016, %v76
  %v1019 = vsub.f32 %v1007, %v1017
  %v1020 = vsub.f32 %v1008, %v1018
  %v1021 = vmul.f32 %v1019, %v1019
  %v1022 = vmul.f32 %v1020, %v1020
  %v1023 = vsel %vm63, %v1021, 0.0
  %1024 = vadd.xlane.f32.xlu0 %v1023
  %v1025 = vpop.xlane.xlu0 %1024
  %v1026 = vsel %vm63, %v1022, 0.0
  %1027 = vadd.xlane.f32.xlu0 %v1026
  %v1028 = vpop.xlane.xlu0 %1027
  %v1029 = vmul.f32 %v1025, %v76
  %v1030 = vmul.f32 %v1028, %v76
  %v1031 = vadd.f32 %v1029, 1e-05
  %v1032 = vadd.f32 %v1030, 1e-05
  %v1033 = vrsqrt.pop %v1031
  %v1034 = vmul.f32 %v1033, %v1031
  %v1035 = vmul.f32 %v1034, %v1033
  %v1036 = vmul.f32 0.5, %v1035
  %v1037 = vsub.f32 1.5, %v1036
  %v1038 = vmul.f32 %v1033, %v1037
  %vm1039 = vweird.f32 %v1031
  %vm1040 = vweird.f32 %v1033
  %vm1041 = vmor %vm1039, %vm1040
  %v1042 = vsel %vm1041, %v1033, %v1038
  %v1043 = vrsqrt.pop %v1032
  %v1044 = vmul.f32 %v1043, %v1032
  %v1045 = vmul.f32 %v1044, %v1043
  %v1046 = vmul.f32 0.5, %v1045
  %v1047 = vsub.f32 1.5, %v1046
  %v1048 = vmul.f32 %v1043, %v1047
  %vm1049 = vweird.f32 %v1032
  %vm1050 = vweird.f32 %v1043
  %vm1051 = vmor %vm1049, %vm1050
  %v1052 = vsel %vm1051, %v1043, %v1048
  %v1053 = vmul.f32 %v1019, %v1042
  %v1054 = vmul.f32 %v1020, %v1052
  %v1055 = vperm.slane %v1010, 0
  %v1056 = vmul.f32 %v1053, %v1055
  %v1057 = vmul.f32 %v1054, %v1055
  %1059 = vrot.lane.b32.xlu0 %v1055, 96
  %v1060 = vpop.permute.xlu0 %1059
  %v1062 = vadd.f32 %v1056, %v1060
  %v1063 = vadd.f32 %v1057, %v1060
  %s1064 = scalar_lea.vmem %s2, 32
  %v1065 = vld [vmem:[%s1064] sm:$0xff]
  %v1066 = vld [vmem:[%s1064 + $0x8] sm:$0xff]
  %v1067 = vld [vmem:[%s1064 + $0x10] sm:$0xff]
  %v1068 = vld [vmem:[%s1064 + $0x18] sm:$0xff]
  %v1070 = vsel %vm63, %v1062, 0
  %v1073 = vsel %vm63, %v1063, 0
  %1075 = vmatpush.msra.mxu0 0.0
  %1076 = vmatpush.msra.mxu0 0.0
  %1077 = vmatpush.msra.mxu0 0.0
  %1078 = vmatpush.msra.mxu0 0.0
  %1079 = vmatpush.msra.mxu0 0.0
  %1080 = vmatpush.msra.mxu0 0.0
  %1081 = vmatpush.msra.mxu0 0.0
  %1082 = vmatpush.msra.mxu0 0.0
  %1083 = vmatpush.msra.mxu0 0.0
  %1084 = vmatpush.msra.mxu0 0.0
  %1085 = vmatpush.msra.mxu0 0.0
  %1086 = vmatpush.msra.mxu0 0.0
  %1087 = vmatpush.msra.mxu0 %v1068
  %1088 = vmatpush.msra.mxu0 %v1067
  %1089 = vmatpush.msra.mxu0 %v1066
  %1090 = vmatpush.msra.mxu0 %v1065
  %1091 = vmatmul.f32.gmra.mxu0 %v1070
  %v1092 = vpop.f32.mrf.mxu0
  %v1093 = vadd.f32 0.0, %v1092
  %1094 = vmatmul.f32.gmra.mxu0 %v1073
  %v1095 = vpop.f32.mrf.mxu0
  %v1096 = vadd.f32 0.0, %v1095
  %1097 = vdwg.mxu0
  %1099 = vrot.lane.b32.xlu0 %v1093, 96
  %v1100 = vpop.permute.xlu0 %1099
  %v1101 = vsel %vm160, %v1093, 0
  %v1103 = vsel %vm160, %v1100, 0
  %1105 = vmatpush.xpose.msra.mxu0 0.0
  %1106 = vmatpush.xpose.msra.mxu0 0.0
  %1107 = vmatpush.xpose.msra.mxu0 0.0
  %1108 = vmatpush.xpose.msra.mxu0 0.0
  %1109 = vmatpush.xpose.msra.mxu0 0.0
  %1110 = vmatpush.xpose.msra.mxu0 0.0
  %1111 = vmatpush.xpose.msra.mxu0 0.0
  %1112 = vmatpush.xpose.msra.mxu0 0.0
  %1113 = vmatpush.xpose.msra.mxu0 0.0
  %1114 = vmatpush.xpose.msra.mxu0 0.0
  %1115 = vmatpush.xpose.msra.mxu0 0.0
  %1116 = vmatpush.xpose.msra.mxu0 0.0
  %1117 = vmatpush.xpose.msra.mxu0 0.0
  %1118 = vmatpush.xpose.msra.mxu0 0.0
  %1119 = vmatpush.xpose.msra.mxu0 0.0
  %1120 = vmatpush.xpose.msra.mxu0 %v1103
  %1121 = vmatmul.f32.gmra.mxu0 %v1101
  %v1122 = vpop.f32.mrf.mxu0
  %v1123 = vadd.f32 0.0, %v1122
  %1124 = vdwg.mxu0
  %v1125 = vsel %vm160, %v1123, -inf
  %1126 = vmax.xlane.f32.xlu0 %v1125
  %v1127 = vpop.xlane.xlu0 %1126
  %v1128 = vsub.f32 %v1123, %v1127
  %v1129 = vmul.f32 %v1128, 1.442695
  %v1130 = vpow.pop %v1129
  %v1131 = vsel %vm160, %v1130, 0.0
  %1132 = vadd.xlane.f32.xlu0 %v1131
  %v1133 = vpop.xlane.xlu0 %1132
  %v1134 = vrcp.pop %v1133
  %v1135 = vmul.f32 %v1133, %v1134
  %v1136 = vsub.f32 1.0, %v1135
  %v1137 = vmul.f32 %v1134, %v1136
  %v1138 = vadd.f32 %v1134, %v1137
  %vm1139 = vweird.f32 %v1133
  %vm1140 = vweird.f32 %v1134
  %vm1141 = vmor %vm1139, %vm1140
  %v1142 = vsel %vm1141, %v1134, %v1138
  %v1143 = vand.u32 2147483647, %v1133
  %vm1144 = vcmp.eq.f32.partialorder %v1143, 8.507059e+37
  %v1145 = vand.u32 %v1133, 2147483648
  %v1146 = vor.u32 1.1754944e-38, %v1145
  %v1147 = vsel %vm1144, %v1146, %v1142
  %v1148 = vmul.f32 %v1130, %v1147
  %1149 = vrot.lane.b32.xlu0 %v1093, 64
  %v1150 = vpop.permute.xlu0 %1149
  %v1153 = vsel %vm160, %v1148, 0
  %1155 = vmatpush.msra.mxu0 0.0
  %1156 = vmatpush.msra.mxu0 0.0
  %1157 = vmatpush.msra.mxu0 0.0
  %1158 = vmatpush.msra.mxu0 0.0
  %1159 = vmatpush.msra.mxu0 0.0
  %1160 = vmatpush.msra.mxu0 0.0
  %1161 = vmatpush.msra.mxu0 0.0
  %1162 = vmatpush.msra.mxu0 0.0
  %1163 = vmatpush.msra.mxu0 0.0
  %1164 = vmatpush.msra.mxu0 0.0
  %1165 = vmatpush.msra.mxu0 0.0
  %1166 = vmatpush.msra.mxu0 0.0
  %1167 = vmatpush.msra.mxu0 0.0
  %1168 = vmatpush.msra.mxu0 0.0
  %1169 = vmatpush.msra.mxu0 0.0
  %1170 = vmatpush.msra.mxu0 %v1150
  %1171 = vmatmul.f32.gmra.mxu0 %v1153
  %v1172 = vpop.f32.mrf.mxu0
  %v1173 = vadd.f32 0.0, %v1172
  %1174 = vdwg.mxu0
  %1175 = vrot.lane.b32.xlu0 %v1093, 120
  %v1176 = vpop.permute.xlu0 %1175
  %1177 = vrot.lane.b32.xlu0 %v1093, 88
  %v1178 = vpop.permute.xlu0 %1177
  %v1179 = vsel %vm160, %v1176, 0
  %v1181 = vsel %vm160, %v1178, 0
  %1183 = vmatpush.xpose.msra.mxu0 0.0
  %1184 = vmatpush.xpose.msra.mxu0 0.0
  %1185 = vmatpush.xpose.msra.mxu0 0.0
  %1186 = vmatpush.xpose.msra.mxu0 0.0
  %1187 = vmatpush.xpose.msra.mxu0 0.0
  %1188 = vmatpush.xpose.msra.mxu0 0.0
  %1189 = vmatpush.xpose.msra.mxu0 0.0
  %1190 = vmatpush.xpose.msra.mxu0 0.0
  %1191 = vmatpush.xpose.msra.mxu0 0.0
  %1192 = vmatpush.xpose.msra.mxu0 0.0
  %1193 = vmatpush.xpose.msra.mxu0 0.0
  %1194 = vmatpush.xpose.msra.mxu0 0.0
  %1195 = vmatpush.xpose.msra.mxu0 0.0
  %1196 = vmatpush.xpose.msra.mxu0 0.0
  %1197 = vmatpush.xpose.msra.mxu0 0.0
  %1198 = vmatpush.xpose.msra.mxu0 %v1181
  %1199 = vmatmul.f32.gmra.mxu0 %v1179
  %v1200 = vpop.f32.mrf.mxu0
  %v1201 = vadd.f32 0.0, %v1200
  %1202 = vdwg.mxu0
  %v1203 = vsel %vm160, %v1201, -inf
  %1204 = vmax.xlane.f32.xlu0 %v1203
  %v1205 = vpop.xlane.xlu0 %1204
  %v1206 = vsub.f32 %v1201, %v1205
  %v1207 = vmul.f32 %v1206, 1.442695
  %v1208 = vpow.pop %v1207
  %v1209 = vsel %vm160, %v1208, 0.0
  %1210 = vadd.xlane.f32.xlu0 %v1209
  %v1211 = vpop.xlane.xlu0 %1210
  %v1212 = vrcp.pop %v1211
  %v1213 = vmul.f32 %v1211, %v1212
  %v1214 = vsub.f32 1.0, %v1213
  %v1215 = vmul.f32 %v1212, %v1214
  %v1216 = vadd.f32 %v1212, %v1215
  %vm1217 = vweird.f32 %v1211
  %vm1218 = vweird.f32 %v1212
  %vm1219 = vmor %vm1217, %vm1218
  %v1220 = vsel %vm1219, %v1212, %v1216
  %v1221 = vand.u32 2147483647, %v1211
  %vm1222 = vcmp.eq.f32.partialorder %v1221, 8.507059e+37
  %v1223 = vand.u32 %v1211, 2147483648
  %v1224 = vor.u32 1.1754944e-38, %v1223
  %v1225 = vsel %vm1222, %v1224, %v1220
  %v1226 = vmul.f32 %v1208, %v1225
  %1227 = vrot.lane.b32.xlu0 %v1093, 56
  %v1228 = vpop.permute.xlu0 %1227
  %v1231 = vsel %vm160, %v1226, 0
  %1233 = vmatpush.msra.mxu0 0.0
  %1234 = vmatpush.msra.mxu0 0.0
  %1235 = vmatpush.msra.mxu0 0.0
  %1236 = vmatpush.msra.mxu0 0.0
  %1237 = vmatpush.msra.mxu0 0.0
  %1238 = vmatpush.msra.mxu0 0.0
  %1239 = vmatpush.msra.mxu0 0.0
  %1240 = vmatpush.msra.mxu0 0.0
  %1241 = vmatpush.msra.mxu0 0.0
  %1242 = vmatpush.msra.mxu0 0.0
  %1243 = vmatpush.msra.mxu0 0.0
  %1244 = vmatpush.msra.mxu0 0.0
  %1245 = vmatpush.msra.mxu0 0.0
  %1246 = vmatpush.msra.mxu0 0.0
  %1247 = vmatpush.msra.mxu0 0.0
  %1248 = vmatpush.msra.mxu0 %v1228
  %1249 = vmatmul.f32.gmra.mxu0 %v1231
  %v1250 = vpop.f32.mrf.mxu0
  %v1251 = vadd.f32 0.0, %v1250
  %1252 = vdwg.mxu0
  %1253 = vrot.lane.b32.xlu0 %v1093, 112
  %v1254 = vpop.permute.xlu0 %1253
  %1255 = vrot.lane.b32.xlu0 %v1093, 80
  %v1256 = vpop.permute.xlu0 %1255
  %v1257 = vsel %vm160, %v1254, 0
  %v1259 = vsel %vm160, %v1256, 0
  %1261 = vmatpush.xpose.msra.mxu0 0.0
  %1262 = vmatpush.xpose.msra.mxu0 0.0
  %1263 = vmatpush.xpose.msra.mxu0 0.0
  %1264 = vmatpush.xpose.msra.mxu0 0.0
  %1265 = vmatpush.xpose.msra.mxu0 0.0
  %1266 = vmatpush.xpose.msra.mxu0 0.0
  %1267 = vmatpush.xpose.msra.mxu0 0.0
  %1268 = vmatpush.xpose.msra.mxu0 0.0
  %1269 = vmatpush.xpose.msra.mxu0 0.0
  %1270 = vmatpush.xpose.msra.mxu0 0.0
  %1271 = vmatpush.xpose.msra.mxu0 0.0
  %1272 = vmatpush.xpose.msra.mxu0 0.0
  %1273 = vmatpush.xpose.msra.mxu0 0.0
  %1274 = vmatpush.xpose.msra.mxu0 0.0
  %1275 = vmatpush.xpose.msra.mxu0 0.0
  %1276 = vmatpush.xpose.msra.mxu0 %v1259
  %1277 = vmatmul.f32.gmra.mxu0 %v1257
  %v1278 = vpop.f32.mrf.mxu0
  %v1279 = vadd.f32 0.0, %v1278
  %1280 = vdwg.mxu0
  %v1281 = vsel %vm160, %v1279, -inf
  %1282 = vmax.xlane.f32.xlu0 %v1281
  %v1283 = vpop.xlane.xlu0 %1282
  %v1284 = vsub.f32 %v1279, %v1283
  %v1285 = vmul.f32 %v1284, 1.442695
  %v1286 = vpow.pop %v1285
  %v1287 = vsel %vm160, %v1286, 0.0
  %1288 = vadd.xlane.f32.xlu0 %v1287
  %v1289 = vpop.xlane.xlu0 %1288
  %v1290 = vrcp.pop %v1289
  %v1291 = vmul.f32 %v1289, %v1290
  %v1292 = vsub.f32 1.0, %v1291
  %v1293 = vmul.f32 %v1290, %v1292
  %v1294 = vadd.f32 %v1290, %v1293
  %vm1295 = vweird.f32 %v1289
  %vm1296 = vweird.f32 %v1290
  %vm1297 = vmor %vm1295, %vm1296
  %v1298 = vsel %vm1297, %v1290, %v1294
  %v1299 = vand.u32 2147483647, %v1289
  %vm1300 = vcmp.eq.f32.partialorder %v1299, 8.507059e+37
  %v1301 = vand.u32 %v1289, 2147483648
  %v1302 = vor.u32 1.1754944e-38, %v1301
  %v1303 = vsel %vm1300, %v1302, %v1298
  %v1304 = vmul.f32 %v1286, %v1303
  %1305 = vrot.lane.b32.xlu0 %v1093, 48
  %v1306 = vpop.permute.xlu0 %1305
  %v1309 = vsel %vm160, %v1304, 0
  %1311 = vmatpush.msra.mxu0 0.0
  %1312 = vmatpush.msra.mxu0 0.0
  %1313 = vmatpush.msra.mxu0 0.0
  %1314 = vmatpush.msra.mxu0 0.0
  %1315 = vmatpush.msra.mxu0 0.0
  %1316 = vmatpush.msra.mxu0 0.0
  %1317 = vmatpush.msra.mxu0 0.0
  %1318 = vmatpush.msra.mxu0 0.0
  %1319 = vmatpush.msra.mxu0 0.0
  %1320 = vmatpush.msra.mxu0 0.0
  %1321 = vmatpush.msra.mxu0 0.0
  %1322 = vmatpush.msra.mxu0 0.0
  %1323 = vmatpush.msra.mxu0 0.0
  %1324 = vmatpush.msra.mxu0 0.0
  %1325 = vmatpush.msra.mxu0 0.0
  %1326 = vmatpush.msra.mxu0 %v1306
  %1327 = vmatmul.f32.gmra.mxu0 %v1309
  %v1328 = vpop.f32.mrf.mxu0
  %v1329 = vadd.f32 0.0, %v1328
  %1330 = vdwg.mxu0
  %1331 = vrot.lane.b32.xlu0 %v1093, 104
  %v1332 = vpop.permute.xlu0 %1331
  %1333 = vrot.lane.b32.xlu0 %v1093, 72
  %v1334 = vpop.permute.xlu0 %1333
  %v1335 = vsel %vm160, %v1332, 0
  %v1337 = vsel %vm160, %v1334, 0
  %1339 = vmatpush.xpose.msra.mxu0 0.0
  %1340 = vmatpush.xpose.msra.mxu0 0.0
  %1341 = vmatpush.xpose.msra.mxu0 0.0
  %1342 = vmatpush.xpose.msra.mxu0 0.0
  %1343 = vmatpush.xpose.msra.mxu0 0.0
  %1344 = vmatpush.xpose.msra.mxu0 0.0
  %1345 = vmatpush.xpose.msra.mxu0 0.0
  %1346 = vmatpush.xpose.msra.mxu0 0.0
  %1347 = vmatpush.xpose.msra.mxu0 0.0
  %1348 = vmatpush.xpose.msra.mxu0 0.0
  %1349 = vmatpush.xpose.msra.mxu0 0.0
  %1350 = vmatpush.xpose.msra.mxu0 0.0
  %1351 = vmatpush.xpose.msra.mxu0 0.0
  %1352 = vmatpush.xpose.msra.mxu0 0.0
  %1353 = vmatpush.xpose.msra.mxu0 0.0
  %1354 = vmatpush.xpose.msra.mxu0 %v1337
  %1355 = vmatmul.f32.gmra.mxu0 %v1335
  %v1356 = vpop.f32.mrf.mxu0
  %v1357 = vadd.f32 0.0, %v1356
  %1358 = vdwg.mxu0
  %v1359 = vsel %vm160, %v1357, -inf
  %1360 = vmax.xlane.f32.xlu0 %v1359
  %v1361 = vpop.xlane.xlu0 %1360
  %v1362 = vsub.f32 %v1357, %v1361
  %v1363 = vmul.f32 %v1362, 1.442695
  %v1364 = vpow.pop %v1363
  %v1365 = vsel %vm160, %v1364, 0.0
  %1366 = vadd.xlane.f32.xlu0 %v1365
  %v1367 = vpop.xlane.xlu0 %1366
  %v1368 = vrcp.pop %v1367
  %v1369 = vmul.f32 %v1367, %v1368
  %v1370 = vsub.f32 1.0, %v1369
  %v1371 = vmul.f32 %v1368, %v1370
  %v1372 = vadd.f32 %v1368, %v1371
  %vm1373 = vweird.f32 %v1367
  %vm1374 = vweird.f32 %v1368
  %vm1375 = vmor %vm1373, %vm1374
  %v1376 = vsel %vm1375, %v1368, %v1372
  %v1377 = vand.u32 2147483647, %v1367
  %vm1378 = vcmp.eq.f32.partialorder %v1377, 8.507059e+37
  %v1379 = vand.u32 %v1367, 2147483648
  %v1380 = vor.u32 1.1754944e-38, %v1379
  %v1381 = vsel %vm1378, %v1380, %v1376
  %v1382 = vmul.f32 %v1364, %v1381
  %1383 = vrot.lane.b32.xlu0 %v1093, 40
  %v1384 = vpop.permute.xlu0 %1383
  %v1387 = vsel %vm160, %v1382, 0
  %1389 = vmatpush.msra.mxu0 0.0
  %1390 = vmatpush.msra.mxu0 0.0
  %1391 = vmatpush.msra.mxu0 0.0
  %1392 = vmatpush.msra.mxu0 0.0
  %1393 = vmatpush.msra.mxu0 0.0
  %1394 = vmatpush.msra.mxu0 0.0
  %1395 = vmatpush.msra.mxu0 0.0
  %1396 = vmatpush.msra.mxu0 0.0
  %1397 = vmatpush.msra.mxu0 0.0
  %1398 = vmatpush.msra.mxu0 0.0
  %1399 = vmatpush.msra.mxu0 0.0
  %1400 = vmatpush.msra.mxu0 0.0
  %1401 = vmatpush.msra.mxu0 0.0
  %1402 = vmatpush.msra.mxu0 0.0
  %1403 = vmatpush.msra.mxu0 0.0
  %1404 = vmatpush.msra.mxu0 %v1384
  %1405 = vmatmul.f32.gmra.mxu0 %v1387
  %v1406 = vpop.f32.mrf.mxu0
  %v1407 = vadd.f32 0.0, %v1406
  %1408 = vdwg.mxu0
  %1410 = vrot.lane.b32.xlu0 %v1251, 8
  %v1411 = vpop.permute.xlu0 %1410
  %1414 = vrot.lane.b32.xlu0 %v1329, 16
  %v1415 = vpop.permute.xlu0 %1414
  %1418 = vrot.lane.b32.xlu0 %v1407, 24
  %v1419 = vpop.permute.xlu0 %1418
  %v1421 = vsel %vm160, %v1173, %v1411
  %v1422 = vsel %vm482, %v1421, %v1415
  %v1423 = vsel %vm484, %v1422, %v1419
  %1425 = vrot.lane.b32.xlu0 %v1096, 96
  %v1426 = vpop.permute.xlu0 %1425
  %v1427 = vsel %vm160, %v1096, 0
  %v1429 = vsel %vm160, %v1426, 0
  %1431 = vmatpush.xpose.msra.mxu0 0.0
  %1432 = vmatpush.xpose.msra.mxu0 0.0
  %1433 = vmatpush.xpose.msra.mxu0 0.0
  %1434 = vmatpush.xpose.msra.mxu0 0.0
  %1435 = vmatpush.xpose.msra.mxu0 0.0
  %1436 = vmatpush.xpose.msra.mxu0 0.0
  %1437 = vmatpush.xpose.msra.mxu0 0.0
  %1438 = vmatpush.xpose.msra.mxu0 0.0
  %1439 = vmatpush.xpose.msra.mxu0 0.0
  %1440 = vmatpush.xpose.msra.mxu0 0.0
  %1441 = vmatpush.xpose.msra.mxu0 0.0
  %1442 = vmatpush.xpose.msra.mxu0 0.0
  %1443 = vmatpush.xpose.msra.mxu0 0.0
  %1444 = vmatpush.xpose.msra.mxu0 0.0
  %1445 = vmatpush.xpose.msra.mxu0 0.0
  %1446 = vmatpush.xpose.msra.mxu0 %v1429
  %1447 = vmatmul.f32.gmra.mxu0 %v1427
  %v1448 = vpop.f32.mrf.mxu0
  %v1449 = vadd.f32 0.0, %v1448
  %1450 = vdwg.mxu0
  %v1451 = vsel %vm160, %v1449, -inf
  %1452 = vmax.xlane.f32.xlu0 %v1451
  %v1453 = vpop.xlane.xlu0 %1452
  %v1454 = vsub.f32 %v1449, %v1453
  %v1455 = vmul.f32 %v1454, 1.442695
  %v1456 = vpow.pop %v1455
  %v1457 = vsel %vm160, %v1456, 0.0
  %1458 = vadd.xlane.f32.xlu0 %v1457
  %v1459 = vpop.xlane.xlu0 %1458
  %v1460 = vrcp.pop %v1459
  %v1461 = vmul.f32 %v1459, %v1460
  %v1462 = vsub.f32 1.0, %v1461
  %v1463 = vmul.f32 %v1460, %v1462
  %v1464 = vadd.f32 %v1460, %v1463
  %vm1465 = vweird.f32 %v1459
  %vm1466 = vweird.f32 %v1460
  %vm1467 = vmor %vm1465, %vm1466
  %v1468 = vsel %vm1467, %v1460, %v1464
  %v1469 = vand.u32 2147483647, %v1459
  %vm1470 = vcmp.eq.f32.partialorder %v1469, 8.507059e+37
  %v1471 = vand.u32 %v1459, 2147483648
  %v1472 = vor.u32 1.1754944e-38, %v1471
  %v1473 = vsel %vm1470, %v1472, %v1468
  %v1474 = vmul.f32 %v1456, %v1473
  %1475 = vrot.lane.b32.xlu0 %v1096, 64
  %v1476 = vpop.permute.xlu0 %1475
  %v1479 = vsel %vm160, %v1474, 0
  %1481 = vmatpush.msra.mxu0 0.0
  %1482 = vmatpush.msra.mxu0 0.0
  %1483 = vmatpush.msra.mxu0 0.0
  %1484 = vmatpush.msra.mxu0 0.0
  %1485 = vmatpush.msra.mxu0 0.0
  %1486 = vmatpush.msra.mxu0 0.0
  %1487 = vmatpush.msra.mxu0 0.0
  %1488 = vmatpush.msra.mxu0 0.0
  %1489 = vmatpush.msra.mxu0 0.0
  %1490 = vmatpush.msra.mxu0 0.0
  %1491 = vmatpush.msra.mxu0 0.0
  %1492 = vmatpush.msra.mxu0 0.0
  %1493 = vmatpush.msra.mxu0 0.0
  %1494 = vmatpush.msra.mxu0 0.0
  %1495 = vmatpush.msra.mxu0 0.0
  %1496 = vmatpush.msra.mxu0 %v1476
  %1497 = vmatmul.f32.gmra.mxu0 %v1479
  %v1498 = vpop.f32.mrf.mxu0
  %v1499 = vadd.f32 0.0, %v1498
  %1500 = vdwg.mxu0
  %1501 = vrot.lane.b32.xlu0 %v1096, 120
  %v1502 = vpop.permute.xlu0 %1501
  %1503 = vrot.lane.b32.xlu0 %v1096, 88
  %v1504 = vpop.permute.xlu0 %1503
  %v1505 = vsel %vm160, %v1502, 0
  %v1507 = vsel %vm160, %v1504, 0
  %1509 = vmatpush.xpose.msra.mxu0 0.0
  %1510 = vmatpush.xpose.msra.mxu0 0.0
  %1511 = vmatpush.xpose.msra.mxu0 0.0
  %1512 = vmatpush.xpose.msra.mxu0 0.0
  %1513 = vmatpush.xpose.msra.mxu0 0.0
  %1514 = vmatpush.xpose.msra.mxu0 0.0
  %1515 = vmatpush.xpose.msra.mxu0 0.0
  %1516 = vmatpush.xpose.msra.mxu0 0.0
  %1517 = vmatpush.xpose.msra.mxu0 0.0
  %1518 = vmatpush.xpose.msra.mxu0 0.0
  %1519 = vmatpush.xpose.msra.mxu0 0.0
  %1520 = vmatpush.xpose.msra.mxu0 0.0
  %1521 = vmatpush.xpose.msra.mxu0 0.0
  %1522 = vmatpush.xpose.msra.mxu0 0.0
  %1523 = vmatpush.xpose.msra.mxu0 0.0
  %1524 = vmatpush.xpose.msra.mxu0 %v1507
  %1525 = vmatmul.f32.gmra.mxu0 %v1505
  %v1526 = vpop.f32.mrf.mxu0
  %v1527 = vadd.f32 0.0, %v1526
  %1528 = vdwg.mxu0
  %v1529 = vsel %vm160, %v1527, -inf
  %1530 = vmax.xlane.f32.xlu0 %v1529
  %v1531 = vpop.xlane.xlu0 %1530
  %v1532 = vsub.f32 %v1527, %v1531
  %v1533 = vmul.f32 %v1532, 1.442695
  %v1534 = vpow.pop %v1533
  %v1535 = vsel %vm160, %v1534, 0.0
  %1536 = vadd.xlane.f32.xlu0 %v1535
  %v1537 = vpop.xlane.xlu0 %1536
  %v1538 = vrcp.pop %v1537
  %v1539 = vmul.f32 %v1537, %v1538
  %v1540 = vsub.f32 1.0, %v1539
  %v1541 = vmul.f32 %v1538, %v1540
  %v1542 = vadd.f32 %v1538, %v1541
  %vm1543 = vweird.f32 %v1537
  %vm1544 = vweird.f32 %v1538
  %vm1545 = vmor %vm1543, %vm1544
  %v1546 = vsel %vm1545, %v1538, %v1542
  %v1547 = vand.u32 2147483647, %v1537
  %vm1548 = vcmp.eq.f32.partialorder %v1547, 8.507059e+37
  %v1549 = vand.u32 %v1537, 2147483648
  %v1550 = vor.u32 1.1754944e-38, %v1549
  %v1551 = vsel %vm1548, %v1550, %v1546
  %v1552 = vmul.f32 %v1534, %v1551
  %1553 = vrot.lane.b32.xlu0 %v1096, 56
  %v1554 = vpop.permute.xlu0 %1553
  %v1557 = vsel %vm160, %v1552, 0
  %1559 = vmatpush.msra.mxu0 0.0
  %1560 = vmatpush.msra.mxu0 0.0
  %1561 = vmatpush.msra.mxu0 0.0
  %1562 = vmatpush.msra.mxu0 0.0
  %1563 = vmatpush.msra.mxu0 0.0
  %1564 = vmatpush.msra.mxu0 0.0
  %1565 = vmatpush.msra.mxu0 0.0
  %1566 = vmatpush.msra.mxu0 0.0
  %1567 = vmatpush.msra.mxu0 0.0
  %1568 = vmatpush.msra.mxu0 0.0
  %1569 = vmatpush.msra.mxu0 0.0
  %1570 = vmatpush.msra.mxu0 0.0
  %1571 = vmatpush.msra.mxu0 0.0
  %1572 = vmatpush.msra.mxu0 0.0
  %1573 = vmatpush.msra.mxu0 0.0
  %1574 = vmatpush.msra.mxu0 %v1554
  %1575 = vmatmul.f32.gmra.mxu0 %v1557
  %v1576 = vpop.f32.mrf.mxu0
  %v1577 = vadd.f32 0.0, %v1576
  %1578 = vdwg.mxu0
  %1579 = vrot.lane.b32.xlu0 %v1096, 112
  %v1580 = vpop.permute.xlu0 %1579
  %1581 = vrot.lane.b32.xlu0 %v1096, 80
  %v1582 = vpop.permute.xlu0 %1581
  %v1583 = vsel %vm160, %v1580, 0
  %v1585 = vsel %vm160, %v1582, 0
  %1587 = vmatpush.xpose.msra.mxu0 0.0
  %1588 = vmatpush.xpose.msra.mxu0 0.0
  %1589 = vmatpush.xpose.msra.mxu0 0.0
  %1590 = vmatpush.xpose.msra.mxu0 0.0
  %1591 = vmatpush.xpose.msra.mxu0 0.0
  %1592 = vmatpush.xpose.msra.mxu0 0.0
  %1593 = vmatpush.xpose.msra.mxu0 0.0
  %1594 = vmatpush.xpose.msra.mxu0 0.0
  %1595 = vmatpush.xpose.msra.mxu0 0.0
  %1596 = vmatpush.xpose.msra.mxu0 0.0
  %1597 = vmatpush.xpose.msra.mxu0 0.0
  %1598 = vmatpush.xpose.msra.mxu0 0.0
  %1599 = vmatpush.xpose.msra.mxu0 0.0
  %1600 = vmatpush.xpose.msra.mxu0 0.0
  %1601 = vmatpush.xpose.msra.mxu0 0.0
  %1602 = vmatpush.xpose.msra.mxu0 %v1585
  %1603 = vmatmul.f32.gmra.mxu0 %v1583
  %v1604 = vpop.f32.mrf.mxu0
  %v1605 = vadd.f32 0.0, %v1604
  %1606 = vdwg.mxu0
  %v1607 = vsel %vm160, %v1605, -inf
  %1608 = vmax.xlane.f32.xlu0 %v1607
  %v1609 = vpop.xlane.xlu0 %1608
  %v1610 = vsub.f32 %v1605, %v1609
  %v1611 = vmul.f32 %v1610, 1.442695
  %v1612 = vpow.pop %v1611
  %v1613 = vsel %vm160, %v1612, 0.0
  %1614 = vadd.xlane.f32.xlu0 %v1613
  %v1615 = vpop.xlane.xlu0 %1614
  %v1616 = vrcp.pop %v1615
  %v1617 = vmul.f32 %v1615, %v1616
  %v1618 = vsub.f32 1.0, %v1617
  %v1619 = vmul.f32 %v1616, %v1618
  %v1620 = vadd.f32 %v1616, %v1619
  %vm1621 = vweird.f32 %v1615
  %vm1622 = vweird.f32 %v1616
  %vm1623 = vmor %vm1621, %vm1622
  %v1624 = vsel %vm1623, %v1616, %v1620
  %v1625 = vand.u32 2147483647, %v1615
  %vm1626 = vcmp.eq.f32.partialorder %v1625, 8.507059e+37
  %v1627 = vand.u32 %v1615, 2147483648
  %v1628 = vor.u32 1.1754944e-38, %v1627
  %v1629 = vsel %vm1626, %v1628, %v1624
  %v1630 = vmul.f32 %v1612, %v1629
  %1631 = vrot.lane.b32.xlu0 %v1096, 48
  %v1632 = vpop.permute.xlu0 %1631
  %v1635 = vsel %vm160, %v1630, 0
  %1637 = vmatpush.msra.mxu0 0.0
  %1638 = vmatpush.msra.mxu0 0.0
  %1639 = vmatpush.msra.mxu0 0.0
  %1640 = vmatpush.msra.mxu0 0.0
  %1641 = vmatpush.msra.mxu0 0.0
  %1642 = vmatpush.msra.mxu0 0.0
  %1643 = vmatpush.msra.mxu0 0.0
  %1644 = vmatpush.msra.mxu0 0.0
  %1645 = vmatpush.msra.mxu0 0.0
  %1646 = vmatpush.msra.mxu0 0.0
  %1647 = vmatpush.msra.mxu0 0.0
  %1648 = vmatpush.msra.mxu0 0.0
  %1649 = vmatpush.msra.mxu0 0.0
  %1650 = vmatpush.msra.mxu0 0.0
  %1651 = vmatpush.msra.mxu0 0.0
  %1652 = vmatpush.msra.mxu0 %v1632
  %1653 = vmatmul.f32.gmra.mxu0 %v1635
  %v1654 = vpop.f32.mrf.mxu0
  %v1655 = vadd.f32 0.0, %v1654
  %1656 = vdwg.mxu0
  %1657 = vrot.lane.b32.xlu0 %v1096, 104
  %v1658 = vpop.permute.xlu0 %1657
  %1659 = vrot.lane.b32.xlu0 %v1096, 72
  %v1660 = vpop.permute.xlu0 %1659
  %v1661 = vsel %vm160, %v1658, 0
  %v1663 = vsel %vm160, %v1660, 0
  %1665 = vmatpush.xpose.msra.mxu0 0.0
  %1666 = vmatpush.xpose.msra.mxu0 0.0
  %1667 = vmatpush.xpose.msra.mxu0 0.0
  %1668 = vmatpush.xpose.msra.mxu0 0.0
  %1669 = vmatpush.xpose.msra.mxu0 0.0
  %1670 = vmatpush.xpose.msra.mxu0 0.0
  %1671 = vmatpush.xpose.msra.mxu0 0.0
  %1672 = vmatpush.xpose.msra.mxu0 0.0
  %1673 = vmatpush.xpose.msra.mxu0 0.0
  %1674 = vmatpush.xpose.msra.mxu0 0.0
  %1675 = vmatpush.xpose.msra.mxu0 0.0
  %1676 = vmatpush.xpose.msra.mxu0 0.0
  %1677 = vmatpush.xpose.msra.mxu0 0.0
  %1678 = vmatpush.xpose.msra.mxu0 0.0
  %1679 = vmatpush.xpose.msra.mxu0 0.0
  %1680 = vmatpush.xpose.msra.mxu0 %v1663
  %1681 = vmatmul.f32.gmra.mxu0 %v1661
  %v1682 = vpop.f32.mrf.mxu0
  %v1683 = vadd.f32 0.0, %v1682
  %1684 = vdwg.mxu0
  %v1685 = vsel %vm160, %v1683, -inf
  %1686 = vmax.xlane.f32.xlu0 %v1685
  %v1687 = vpop.xlane.xlu0 %1686
  %v1688 = vsub.f32 %v1683, %v1687
  %v1689 = vmul.f32 %v1688, 1.442695
  %v1690 = vpow.pop %v1689
  %v1691 = vsel %vm160, %v1690, 0.0
  %1692 = vadd.xlane.f32.xlu0 %v1691
  %v1693 = vpop.xlane.xlu0 %1692
  %v1694 = vrcp.pop %v1693
  %v1695 = vmul.f32 %v1693, %v1694
  %v1696 = vsub.f32 1.0, %v1695
  %v1697 = vmul.f32 %v1694, %v1696
  %v1698 = vadd.f32 %v1694, %v1697
  %vm1699 = vweird.f32 %v1693
  %vm1700 = vweird.f32 %v1694
  %vm1701 = vmor %vm1699, %vm1700
  %v1702 = vsel %vm1701, %v1694, %v1698
  %v1703 = vand.u32 2147483647, %v1693
  %vm1704 = vcmp.eq.f32.partialorder %v1703, 8.507059e+37
  %v1705 = vand.u32 %v1693, 2147483648
  %v1706 = vor.u32 1.1754944e-38, %v1705
  %v1707 = vsel %vm1704, %v1706, %v1702
  %v1708 = vmul.f32 %v1690, %v1707
  %1709 = vrot.lane.b32.xlu0 %v1096, 40
  %v1710 = vpop.permute.xlu0 %1709
  %v1713 = vsel %vm160, %v1708, 0
  %1715 = vmatpush.msra.mxu0 0.0
  %1716 = vmatpush.msra.mxu0 0.0
  %1717 = vmatpush.msra.mxu0 0.0
  %1718 = vmatpush.msra.mxu0 0.0
  %1719 = vmatpush.msra.mxu0 0.0
  %1720 = vmatpush.msra.mxu0 0.0
  %1721 = vmatpush.msra.mxu0 0.0
  %1722 = vmatpush.msra.mxu0 0.0
  %1723 = vmatpush.msra.mxu0 0.0
  %1724 = vmatpush.msra.mxu0 0.0
  %1725 = vmatpush.msra.mxu0 0.0
  %1726 = vmatpush.msra.mxu0 0.0
  %1727 = vmatpush.msra.mxu0 0.0
  %1728 = vmatpush.msra.mxu0 0.0
  %1729 = vmatpush.msra.mxu0 0.0
  %1730 = vmatpush.msra.mxu0 %v1710
  %1731 = vmatmul.f32.gmra.mxu0 %v1713
  %v1732 = vpop.f32.mrf.mxu0
  %v1733 = vadd.f32 0.0, %v1732
  %1734 = vdwg.mxu0
  %1736 = vrot.lane.b32.xlu0 %v1577, 8
  %v1737 = vpop.permute.xlu0 %1736
  %1740 = vrot.lane.b32.xlu0 %v1655, 16
  %v1741 = vpop.permute.xlu0 %1740
  %1744 = vrot.lane.b32.xlu0 %v1733, 24
  %v1745 = vpop.permute.xlu0 %1744
  %v1747 = vsel %vm160, %v1499, %v1737
  %v1748 = vsel %vm482, %v1747, %v1741
  %v1749 = vsel %vm484, %v1748, %v1745
  %1754 = vrot.lane.b32.xlu0 %v1065, 32
  %v1755 = vpop.permute.xlu0 %1754
  %1756 = vrot.lane.b32.xlu0 %v1066, 32
  %v1757 = vpop.permute.xlu0 %1756
  %1758 = vrot.lane.b32.xlu0 %v1067, 32
  %v1759 = vpop.permute.xlu0 %1758
  %1760 = vrot.lane.b32.xlu0 %v1068, 32
  %v1761 = vpop.permute.xlu0 %1760
  %v1767 = vsel %vm63, %v1423, 0
  %v1770 = vsel %vm63, %v1749, 0
  %1772 = vmatpush.msra.mxu0 0.0
  %1773 = vmatpush.msra.mxu0 0.0
  %1774 = vmatpush.msra.mxu0 0.0
  %1775 = vmatpush.msra.mxu0 0.0
  %1776 = vmatpush.msra.mxu0 0.0
  %1777 = vmatpush.msra.mxu0 0.0
  %1778 = vmatpush.msra.mxu0 0.0
  %1779 = vmatpush.msra.mxu0 0.0
  %1780 = vmatpush.msra.mxu0 0.0
  %1781 = vmatpush.msra.mxu0 0.0
  %1782 = vmatpush.msra.mxu0 0.0
  %1783 = vmatpush.msra.mxu0 0.0
  %1784 = vmatpush.msra.mxu0 %v1761
  %1785 = vmatpush.msra.mxu0 %v1759
  %1786 = vmatpush.msra.mxu0 %v1757
  %1787 = vmatpush.msra.mxu0 %v1755
  %1788 = vmatmul.f32.gmra.mxu0 %v1767
  %v1789 = vpop.f32.mrf.mxu0
  %v1790 = vadd.f32 0.0, %v1789
  %1791 = vmatmul.f32.gmra.mxu0 %v1770
  %v1792 = vpop.f32.mrf.mxu0
  %v1793 = vadd.f32 0.0, %v1792
  %1794 = vdwg.mxu0
  %v1795 = vadd.f32 %v1007, %v1790
  %v1796 = vadd.f32 %v1008, %v1793
  %v1797 = vsel %vm63, %v1795, 0.0
  %1798 = vadd.xlane.f32.xlu0 %v1797
  %v1799 = vpop.xlane.xlu0 %1798
  %v1800 = vsel %vm63, %v1796, 0.0
  %1801 = vadd.xlane.f32.xlu0 %v1800
  %v1802 = vpop.xlane.xlu0 %1801
  %v1803 = vmul.f32 %v1799, %v76
  %v1804 = vmul.f32 %v1802, %v76
  %v1805 = vsub.f32 %v1795, %v1803
  %v1806 = vsub.f32 %v1796, %v1804
  %v1807 = vmul.f32 %v1805, %v1805
  %v1808 = vmul.f32 %v1806, %v1806
  %v1809 = vsel %vm63, %v1807, 0.0
  %1810 = vadd.xlane.f32.xlu0 %v1809
  %v1811 = vpop.xlane.xlu0 %1810
  %v1812 = vsel %vm63, %v1808, 0.0
  %1813 = vadd.xlane.f32.xlu0 %v1812
  %v1814 = vpop.xlane.xlu0 %1813
  %v1815 = vmul.f32 %v1811, %v76
  %v1816 = vmul.f32 %v1814, %v76
  %v1817 = vadd.f32 %v1815, 1e-05
  %v1818 = vadd.f32 %v1816, 1e-05
  %v1819 = vrsqrt.pop %v1817
  %v1820 = vmul.f32 %v1819, %v1817
  %v1821 = vmul.f32 %v1820, %v1819
  %v1822 = vmul.f32 0.5, %v1821
  %v1823 = vsub.f32 1.5, %v1822
  %v1824 = vmul.f32 %v1819, %v1823
  %vm1825 = vweird.f32 %v1817
  %vm1826 = vweird.f32 %v1819
  %vm1827 = vmor %vm1825, %vm1826
  %v1828 = vsel %vm1827, %v1819, %v1824
  %v1829 = vrsqrt.pop %v1818
  %v1830 = vmul.f32 %v1829, %v1818
  %v1831 = vmul.f32 %v1830, %v1829
  %v1832 = vmul.f32 0.5, %v1831
  %v1833 = vsub.f32 1.5, %v1832
  %v1834 = vmul.f32 %v1829, %v1833
  %vm1835 = vweird.f32 %v1818
  %vm1836 = vweird.f32 %v1829
  %vm1837 = vmor %vm1835, %vm1836
  %v1838 = vsel %vm1837, %v1829, %v1834
  %v1839 = vmul.f32 %v1805, %v1828
  %v1840 = vmul.f32 %v1806, %v1838
  %1841 = vrot.lane.b32.xlu0 %v1055, 64
  %v1842 = vpop.permute.xlu0 %1841
  %v1844 = vmul.f32 %v1839, %v1842
  %v1845 = vmul.f32 %v1840, %v1842
  %1846 = vrot.lane.b32.xlu0 %v1055, 32
  %v1847 = vpop.permute.xlu0 %1846
  %v1849 = vadd.f32 %v1844, %v1847
  %v1850 = vadd.f32 %v1845, %v1847
  %s1851 = scalar_lea.vmem %s4, 32
  %v1852 = vld [vmem:[%s1851] sm:$0xff]
  %v1853 = vld [vmem:[%s1851 + $0x8] sm:$0xff]
  %v1854 = vld [vmem:[%s1851 + $0x10] sm:$0xff]
  %v1855 = vld [vmem:[%s1851 + $0x18] sm:$0xff]
  %v1856 = vld [vmem:[%s1009 + $0x1] sm:$0x1]
  %v1857 = vperm.slane %v1856, 0
  %v1859 = vsel %vm63, %v1849, 0
  %v1862 = vsel %vm63, %v1850, 0
  %1864 = vmatpush.msra.mxu0 0.0
  %1865 = vmatpush.msra.mxu0 0.0
  %1866 = vmatpush.msra.mxu0 0.0
  %1867 = vmatpush.msra.mxu0 0.0
  %1868 = vmatpush.msra.mxu0 0.0
  %1869 = vmatpush.msra.mxu0 0.0
  %1870 = vmatpush.msra.mxu0 0.0
  %1871 = vmatpush.msra.mxu0 0.0
  %1872 = vmatpush.msra.mxu0 0.0
  %1873 = vmatpush.msra.mxu0 0.0
  %1874 = vmatpush.msra.mxu0 0.0
  %1875 = vmatpush.msra.mxu0 0.0
  %1876 = vmatpush.msra.mxu0 %v1855
  %1877 = vmatpush.msra.mxu0 %v1854
  %1878 = vmatpush.msra.mxu0 %v1853
  %1879 = vmatpush.msra.mxu0 %v1852
  %1880 = vmatmul.f32.gmra.mxu0 %v1859
  %v1881 = vpop.f32.mrf.mxu0
  %v1882 = vadd.f32 %v1857, %v1881
  %1883 = vmatmul.f32.gmra.mxu0 %v1862
  %v1884 = vpop.f32.mrf.mxu0
  %v1885 = vadd.f32 %v1857, %v1884
  %1886 = vdwg.mxu0
  %v1887 = vmul.f32 %v1882, 0.5
  %v1888 = vmul.f32 %v1885, 0.5
  %v1889 = vmul.f32 %v1882, 0.044715
  %v1890 = vmul.f32 %v1885, 0.044715
  %v1891 = vmul.f32 %v1889, %v1882
  %v1892 = vmul.f32 %v1890, %v1885
  %v1893 = vmul.f32 %v1891, %v1882
  %v1894 = vmul.f32 %v1892, %v1885
  %v1895 = vadd.f32 %v1882, %v1893
  %v1896 = vadd.f32 %v1885, %v1894
  %v1897 = vmul.f32 %v1895, 0.7978846
  %v1898 = vmul.f32 %v1896, 0.7978846
  %v1899 = vtanh.pop %v1897
  %v1900 = vtanh.pop %v1898
  %v1901 = vadd.f32 %v1899, 1.0
  %v1902 = vadd.f32 %v1900, 1.0
  %v1903 = vmul.f32 %v1887, %v1901
  %v1904 = vmul.f32 %v1888, %v1902
  %s1905 = scalar_lea.vmem %s5, 128
  %v1906 = vld [vmem:[%s1905] sm:$0xff]
  %v1907 = vld [vmem:[%s1905 + $0x8] sm:$0xff]
  %v1908 = vld [vmem:[%s1905 + $0x10] sm:$0xff]
  %v1909 = vld [vmem:[%s1905 + $0x18] sm:$0xff]
  %v1910 = vld [vmem:[%s1905 + $0x20] sm:$0xff]
  %v1911 = vld [vmem:[%s1905 + $0x28] sm:$0xff]
  %v1912 = vld [vmem:[%s1905 + $0x30] sm:$0xff]
  %v1913 = vld [vmem:[%s1905 + $0x38] sm:$0xff]
  %v1914 = vld [vmem:[%s1905 + $0x40] sm:$0xff]
  %v1915 = vld [vmem:[%s1905 + $0x48] sm:$0xff]
  %v1916 = vld [vmem:[%s1905 + $0x50] sm:$0xff]
  %v1917 = vld [vmem:[%s1905 + $0x58] sm:$0xff]
  %v1918 = vld [vmem:[%s1905 + $0x60] sm:$0xff]
  %v1919 = vld [vmem:[%s1905 + $0x68] sm:$0xff]
  %v1920 = vld [vmem:[%s1905 + $0x70] sm:$0xff]
  %v1921 = vld [vmem:[%s1905 + $0x78] sm:$0xff]
  %v1922 = vld [vmem:[%s1009 + $0x2] sm:$0x1]
  %v1923 = vperm.slane %v1922, 0
  %1924 = vmatpush.msra.mxu0 %v1921
  %1925 = vmatpush.msra.mxu0 %v1920
  %1926 = vmatpush.msra.mxu0 %v1919
  %1927 = vmatpush.msra.mxu0 %v1918
  %1928 = vmatpush.msra.mxu0 %v1917
  %1929 = vmatpush.msra.mxu0 %v1916
  %1930 = vmatpush.msra.mxu0 %v1915
  %1931 = vmatpush.msra.mxu0 %v1914
  %1932 = vmatpush.msra.mxu0 %v1913
  %1933 = vmatpush.msra.mxu0 %v1912
  %1934 = vmatpush.msra.mxu0 %v1911
  %1935 = vmatpush.msra.mxu0 %v1910
  %1936 = vmatpush.msra.mxu0 %v1909
  %1937 = vmatpush.msra.mxu0 %v1908
  %1938 = vmatpush.msra.mxu0 %v1907
  %1939 = vmatpush.msra.mxu0 %v1906
  %1940 = vmatmul.f32.gmra.mxu0 %v1903
  %v1941 = vpop.f32.mrf.mxu0
  %v1942 = vadd.f32 %v1923, %v1941
  %1943 = vmatmul.f32.gmra.mxu0 %v1904
  %v1944 = vpop.f32.mrf.mxu0
  %v1945 = vadd.f32 %v1923, %v1944
  %1946 = vdwg.mxu0
  %v1947 = vadd.f32 %v1795, %v1942
  %v1948 = vadd.f32 %v1796, %v1945
  %v1949 = vld [vmem:[%s1 + $0x18] sm:$0x1]
  %v1950 = vld [vmem:[%s1 + $0x19] sm:$0x1]
  %v1951 = vsel %vm63, %v1947, 0.0
  %1952 = vadd.xlane.f32.xlu0 %v1951
  %v1953 = vpop.xlane.xlu0 %1952
  %v1954 = vsel %vm63, %v1948, 0.0
  %1955 = vadd.xlane.f32.xlu0 %v1954
  %v1956 = vpop.xlane.xlu0 %1955
  %v1957 = vmul.f32 %v1953, %v76
  %v1958 = vmul.f32 %v1956, %v76
  %v1959 = vsub.f32 %v1947, %v1957
  %v1960 = vsub.f32 %v1948, %v1958
  %v1961 = vmul.f32 %v1959, %v1959
  %v1962 = vmul.f32 %v1960, %v1960
  %v1963 = vsel %vm63, %v1961, 0.0
  %1964 = vadd.xlane.f32.xlu0 %v1963
  %v1965 = vpop.xlane.xlu0 %1964
  %v1966 = vsel %vm63, %v1962, 0.0
  %1967 = vadd.xlane.f32.xlu0 %v1966
  %v1968 = vpop.xlane.xlu0 %1967
  %v1969 = vmul.f32 %v1965, %v76
  %v1970 = vmul.f32 %v1968, %v76
  %v1971 = vadd.f32 %v1969, 1e-05
  %v1972 = vadd.f32 %v1970, 1e-05
  %v1973 = vrsqrt.pop %v1971
  %v1974 = vmul.f32 %v1973, %v1971
  %v1975 = vmul.f32 %v1974, %v1973
  %v1976 = vmul.f32 0.5, %v1975
  %v1977 = vsub.f32 1.5, %v1976
  %v1978 = vmul.f32 %v1973, %v1977
  %vm1979 = vweird.f32 %v1971
  %vm1980 = vweird.f32 %v1973
  %vm1981 = vmor %vm1979, %vm1980
  %v1982 = vsel %vm1981, %v1973, %v1978
  %v1983 = vrsqrt.pop %v1972
  %v1984 = vmul.f32 %v1983, %v1972
  %v1985 = vmul.f32 %v1984, %v1983
  %v1986 = vmul.f32 0.5, %v1985
  %v1987 = vsub.f32 1.5, %v1986
  %v1988 = vmul.f32 %v1983, %v1987
  %vm1989 = vweird.f32 %v1972
  %vm1990 = vweird.f32 %v1983
  %vm1991 = vmor %vm1989, %vm1990
  %v1992 = vsel %vm1991, %v1983, %v1988
  %v1993 = vmul.f32 %v1959, %v1982
  %v1994 = vmul.f32 %v1960, %v1992
  %v1995 = vperm.slane %v1949, 0
  %v1996 = vmul.f32 %v1993, %v1995
  %v1997 = vmul.f32 %v1994, %v1995
  %v1998 = vperm.slane %v1950, 0
  %v1999 = vadd.f32 %v1996, %v1998
  %v2000 = vadd.f32 %v1997, %v1998
  %v2001 = vld [vmem:[%s1 + $0x20] sm:$0xff]
  %v2002 = vld [vmem:[%s1 + $0x28] sm:$0xff]
  %v2003 = vld [vmem:[%s1 + $0x30] sm:$0xff]
  %v2004 = vld [vmem:[%s1 + $0x38] sm:$0xff]
  %v2005 = vld [vmem:[%s1 + $0x1a] sm:$0x1]
  %v2006 = vperm.slane %v2005, 0
  %v2008 = vsel %vm63, %v1999, 0
  %v2011 = vsel %vm63, %v2000, 0
  %2013 = vmatpush.msra.mxu0 0.0
  %2014 = vmatpush.msra.mxu0 0.0
  %2015 = vmatpush.msra.mxu0 0.0
  %2016 = vmatpush.msra.mxu0 0.0
  %2017 = vmatpush.msra.mxu0 0.0
  %2018 = vmatpush.msra.mxu0 0.0
  %2019 = vmatpush.msra.mxu0 0.0
  %2020 = vmatpush.msra.mxu0 0.0
  %2021 = vmatpush.msra.mxu0 0.0
  %2022 = vmatpush.msra.mxu0 0.0
  %2023 = vmatpush.msra.mxu0 0.0
  %2024 = vmatpush.msra.mxu0 0.0
  %2025 = vmatpush.msra.mxu0 %v2004
  %2026 = vmatpush.msra.mxu0 %v2003
  %2027 = vmatpush.msra.mxu0 %v2002
  %2028 = vmatpush.msra.mxu0 %v2001
  %2029 = vmatmul.f32.gmra.mxu0 %v2008
  %v2030 = vpop.f32.mrf.mxu0
  %v2031 = vadd.f32 %v2006, %v2030
  %2032 = vmatmul.f32.gmra.mxu0 %v2011
  %v2033 = vpop.f32.mrf.mxu0
  %v2034 = vadd.f32 %v2006, %v2033
  %2035 = vdwg.mxu0
  %2036 = vst.msk [vmem:[%s6] sm:$0xff] %vm28, %v2031
  %2037 = vst.msk [vmem:[%s6 + $0x8] sm:$0xff] %vm28, %v2034
  // Predicated region
  $region26: #{continuous_transformer_forward.1} parent=0 // pred_check
    _
  $region27: #{continuous_transformer_forward.1} parent=0 // pred_check_branch
    %2039 = sbr.rel (0) target = $region29
  $region28: #{continuous_transformer_forward.1} parent=0 // pred_region
    _
  $region29: #{continuous_transformer_forward.1} parent=0 // pred_fallthru
    _
  // Predicated region
  $region30: #{continuous_transformer_forward.1} parent=0 // pred_check
    _
  $region31: #{continuous_transformer_forward.1} parent=0 // pred_check_branch
    %2041 = sbr.rel (0) target = $region33
  $region32: #{continuous_transformer_forward.1} parent=0 // pred_region
    _
  $region33: #{continuous_transformer_forward.1} parent=0 // pred_fallthru
    _

</llo_original>
